<compile_context>
chip_gen: v5e
topology: v5e:2x2
jax: 0.10.0
libtpu: 0.0.40
codegen_flags: <defaults>
</compile_context>

<pallas_src>
import numpy as np
import jax
import jax.numpy as jnp
from jax.experimental import pallas as pl
from jax.experimental.pallas import tpu as pltpu


# ---------------------------------------------------------------------------
# Host-side constant construction (done once per frame count, cached on module)
# ---------------------------------------------------------------------------
def _hamming_window_np(n_fft):
    # torch.hamming_window(n_fft): w[n] = 0.54 - 0.46*cos(2*pi*n/n_fft)
    n = np.arange(n_fft, dtype=np.float64)
    return 0.54 - 0.46 * np.cos(2.0 * np.pi * n / n_fft)


def _irfft_basis_np(n_fft, normalized):
    # Onesided inverse real DFT as a matmul:
    #   y[j] = sum_k ( Xre[k]*C[k,j] + Xim[k]*S[k,j] )
    freq = n_fft // 2 + 1
    k = np.arange(freq, dtype=np.float64)[:, None]
    j = np.arange(n_fft, dtype=np.float64)[None, :]
    ang = 2.0 * np.pi * k * j / n_fft
    coef = np.full((freq, 1), 2.0)
    coef[0, 0] = 1.0
    if n_fft % 2 == 0:
        coef[-1, 0] = 1.0
    scale = 1.0 / n_fft
    if normalized:
        scale *= np.sqrt(n_fft)
    C = coef * np.cos(ang) * scale
    S = -coef * np.sin(ang) * scale
    return C, S


def _choose_tn(out_len, n_fft, hop, fd):
    """Output-time tile width: lane-dense, >=2 grid steps when possible, VMEM-safe."""
    tn = 512                                   # ~85% of HBM roofline at 512-wide tiles
    if out_len <= tn:
        # split tiny outputs into two tiles so both v7x TensorCores get work
        tn = 128 if out_len <= 128 else -(-((out_len + 1) // 2) // 128) * 128

    def w_tile_bytes(t):                       # bf16 banded-W tile estimate
        bf = (t + n_fft - 1) // hop + 1
        return bf * fd * t * 2

    # keep the double-buffered W tile well under v7x's 64 MiB/TC VMEM
    while tn > 128 and 2 * w_tile_bytes(tn) > 24 * 1024 * 1024:
        tn -= 128
    return tn


def _build_banded_matrix(n_fft, hop, frames, normalized):
    """Band-sparse fused ISTFT matrix + per-tile frame-band index table."""
    assert n_fft % 2 == 0, "center trim below assumes even n_fft (torch default 400)"
    assert frames >= 2, "need at least two frames for a non-empty istft output"
    freq = n_fft // 2 + 1
    fd = freq * 2
    start = n_fft // 2
    out_len = hop * (frames - 1)               # torch.istft(center=True, length=None)
    total_len = n_fft + hop * (frames - 1)

    win = _hamming_window_np(n_fft)
    C, S = _irfft_basis_np(n_fft, normalized)
    Cw = C * win[None, :]                      # window folded into the basis
    Sw = S * win[None, :]

    # overlap-added window^2 envelope (torch-style normalization) + explicit NOLA check
    env = np.zeros(total_len, dtype=np.float64)
    for t in range(frames):
        env[t * hop:t * hop + n_fft] += win * win
    if np.any(env[start:start + out_len] <= 1e-11):
        raise ValueError("NOLA violated: window/hop give a zero overlap-add envelope")
    env_inv = np.zeros_like(env)
    nz = env > 1e-11
    env_inv[nz] = 1.0 / env[nz]

    tn = _choose_tn(out_len, n_fft, hop, fd)
    num_tiles = -(-out_len // tn)
    out_pad = num_tiles * tn                   # pad output width instead of shrinking tn

    # per-tile contributing frame range -> fixed-width band start table
    t_lo = np.empty(num_tiles, dtype=np.int64)
    t_hi = np.empty(num_tiles, dtype=np.int64)
    for n in range(num_tiles):
        c0 = n * tn
        c1 = min(c0 + tn, out_len)
        t_lo[n] = max(0, -(-(c0 + start - (n_fft - 1)) // hop))   # ceil div
        t_hi[n] = min(frames - 1, (c1 - 1 + start) // hop)
    bandframes = int(min(frames, int((t_hi - t_lo + 1).max())))
    starts = np.maximum(0, np.minimum(t_lo, frames - bandframes)).astype(np.int32)

    band_K = bandframes * fd
    band_Kp = -(-band_K // 8) * 8              # pad contraction dim to a sublane multiple

    W = np.zeros((num_tiles, band_Kp, tn), dtype=np.float64)
    for n in range(num_tiles):
        c0 = n * tn
        c1 = min(c0 + tn, out_len)
        s = int(starts[n])
        for tb in range(bandframes):
            t = s + tb
            if t >= frames:
                break
            m0 = max(c0, t * hop - start)      # output sample m <-> signal index m+start
            m1 = min(c1, t * hop + n_fft - start)
            if m1 <= m0:
                continue
            j0 = m0 + start - t * hop
            j1 = j0 + (m1 - m0)
            e = env_inv[m0 + start:m1 + start][None, :]
            r0 = tb * fd                       # row order = (band frame, freq, re/im)
            W[n, r0 + 0:r0 + fd:2, m0 - c0:m1 - c0] = Cw[:, j0:j1] * e
            W[n, r0 + 1:r0 + fd:2, m0 - c0:m1 - c0] = Sw[:, j0:j1] * e

    band_idx = starts[:, None] + np.arange(bandframes, dtype=np.int32)[None, :]
    return W.astype(np.float32), band_idx, band_Kp, tn, out_len, out_pad


# ---------------------------------------------------------------------------
# Pallas kernel: one MXU matmul per output-time tile (bf16 in, f32 accumulate)
# ---------------------------------------------------------------------------
def _istft_band_kernel(x_ref, w_ref, o_ref):
    o_ref[...] = jnp.dot(x_ref[0], w_ref[0], preferred_element_type=jnp.float32)


def istft_pallas(x, W_band, band_idx, band_Kp, tn, out_len, out_pad):
    """x: (B, freq, frames, 2) float.  W_band: (num_tiles, band_Kp, tn) bf16.  -> (B, out_len) f32."""
    B, freq, frames, _ = x.shape
    fd = freq * 2
    num_tiles, bandframes = band_idx.shape
    band_K = bandframes * fd

    # Wrapper-side gather of the per-tile frame bands (static indices; x is tiny vs W).
    x3 = jnp.transpose(x, (0, 2, 1, 3)).reshape(B, frames, fd)        # frames-major
    xb = jnp.take(x3, jnp.asarray(band_idx.reshape(-1)), axis=1)      # (B, tiles*bf, fd)
    xb = xb.reshape(B, num_tiles, band_K)
    xb = jnp.transpose(xb, (1, 0, 2))                                 # (tiles, B, band_K)
    if band_Kp != band_K:
        xb = jnp.pad(xb, ((0, 0), (0, 0), (0, band_Kp - band_K)))
    xb = xb.astype(jnp.bfloat16)

    # Explicit, generation-aware VMEM budget (v7x has 64 MiB/TC vs 128 MiB on v5e/v6e).
    w_tile = band_Kp * tn * 2
    x_tile = max(B, 8) * band_Kp * 2
    o_tile = max(B, 8) * tn * 4
    need = 2 * (w_tile + x_tile + o_tile) + (2 << 20)                 # double-buffered + slack
    try:
        vmem_cap = pltpu.get_tpu_info().vmem_capacity_bytes
    except Exception:
        vmem_cap = 64 * 1024 * 1024
    vmem_limit = int(min(vmem_cap * 3 // 4, max(need, 16 * 1024 * 1024)))

    flops = 2 * B * band_Kp * tn * num_tiles
    bytes_accessed = int(W_band.size) * 2 + int(xb.size) * 2 + B * out_pad * 4

    out = pl.pallas_call(
        _istft_band_kernel,
        out_shape=jax.ShapeDtypeStruct((B, out_pad), jnp.float32),
        grid=(num_tiles,),
        in_specs=[
            pl.BlockSpec((1, B, band_Kp), lambda n: (n, 0, 0)),       # spectrogram band
            pl.BlockSpec((1, band_Kp, tn), lambda n: (n, 0, 0)),      # banded fused matrix
        ],
        out_specs=pl.BlockSpec((B, tn), lambda n: (0, n)),
        compiler_params=pltpu.CompilerParams(
            dimension_semantics=("parallel",),
            vmem_limit_bytes=vmem_limit),
        cost_estimate=pl.CostEstimate(
            flops=flops, transcendentals=0, bytes_accessed=bytes_accessed),
    )(xb, W_band)
    return out[:, :out_len]


# ---------------------------------------------------------------------------
# Module wrapper (constants built once per frame count and cached on device)
# ---------------------------------------------------------------------------
class ISTFT:
    """JAX/Pallas counterpart of the PyTorch ISTFT module."""

    def __init__(self, n_fft=400, hop_length=160, window='hamming_window', normalized=False):
        assert window == 'hamming_window'      # only hamming implemented here
        assert n_fft % 2 == 0
        self.n_fft = n_fft
        self.hop_length = hop_length
        self.normalized = normalized
        self._cache = {}

    def _banded(self, frames):
        ent = self._cache.get(frames)
        if ent is None:
            W_np, band_idx, band_Kp, tn, out_len, out_pad = _build_banded_matrix(
                self.n_fft, self.hop_length, frames, self.normalized)
            ent = (jnp.asarray(W_np, dtype=jnp.bfloat16), band_idx,
                   band_Kp, tn, out_len, out_pad)
            self._cache[frames] = ent
        return ent

    def __call__(self, x):
        B, freq, frames, two = x.shape
        assert two == 2 and freq == self.n_fft // 2 + 1
        W, band_idx, band_Kp, tn, out_len, out_pad = self._banded(frames)
        return istft_pallas(x, W, band_idx, band_Kp, tn, out_len, out_pad)


# ---------------------------------------------------------------------------
# Pure numpy reference (same math, float64) for a sanity check
# ---------------------------------------------------------------------------
def istft_reference_np(x, n_fft, hop, normalized=False):
    B, freq, frames, _ = x.shape
    C, S = _irfft_basis_np(n_fft, normalized)
    win = _hamming_window_np(n_fft)
    xr = np.transpose(x[..., 0], (0, 2, 1)).astype(np.float64)
    xi = np.transpose(x[..., 1], (0, 2, 1)).astype(np.float64)
    y = xr @ C + xi @ S                              # (B, frames, n_fft)
    yw = y * win[None, None, :]
    total_len = n_fft + hop * (frames - 1)
    out = np.zeros((B, total_len))
    env = np.zeros(total_len)
    for t in range(frames):
        out[:, t * hop:t * hop + n_fft] += yw[:, t]
        env[t * hop:t * hop + n_fft] += win ** 2
    out = out / env[None, :]
    start = n_fft // 2
    return out[:, start:start + hop * (frames - 1)].astype(np.float32)


if __name__ == "__main__":
    key = jax.random.PRNGKey(0)
    k1, k2 = jax.random.split(key)

    # Test 1: small module-consistent shapes (batch=2, n_fft=256, hop=64, 8 frames).
    n_fft, hop, frames, B = 256, 64, 8, 2
    freq = n_fft // 2 + 1                            # 129
    x = jax.random.normal(k1, (B, freq, frames, 2), dtype=jnp.float32)
    model = ISTFT(n_fft=n_fft, hop_length=hop, window='hamming_window', normalized=False)
    out = jax.block_until_ready(model(x))
    assert out.shape == (B, hop * (frames - 1)), out.shape
    ref = istft_reference_np(np.asarray(x), n_fft, hop, normalized=False)
    # bf16 weight/input streaming trades ~0.3% relative error for 2x less HBM traffic.
    np.testing.assert_allclose(np.asarray(out), ref, rtol=1e-2, atol=1e-2)

    # Test 2: torch-default config (n_fft=400, hop=160) with enough frames that the
    # band-sparse path (band < frames) and multi-tile grid are actually exercised.
    n_fft2, hop2, frames2 = 400, 160, 24
    freq2 = n_fft2 // 2 + 1                          # 201
    x2 = jax.random.normal(k2, (B, freq2, frames2, 2), dtype=jnp.float32)
    model2 = ISTFT(n_fft=n_fft2, hop_length=hop2, window='hamming_window', normalized=False)
    out2 = jax.block_until_ready(model2(x2))
    assert out2.shape == (B, hop2 * (frames2 - 1)), out2.shape
    ref2 = istft_reference_np(np.asarray(x2), n_fft2, hop2, normalized=False)
    np.testing.assert_allclose(np.asarray(out2), ref2, rtol=1e-2, atol=1e-2)

    print("KERNEL_OK")
</pallas_src>

<mosaic_0001>
module attributes {stable_mosaic.version = 11 : i64} {
  func.func @_istft_band_kernel(%arg0: i32, %arg1: memref<1x2x1552xbf16, #tpu.memory_space<vmem>>, %arg2: memref<1x1552x256xbf16, #tpu.memory_space<vmem>>, %arg3: memref<2x256xf32, #tpu.memory_space<vmem>>) attributes {dimension_semantics = [#tpu.dimension_semantics<parallel>], iteration_bounds = array<i64: 2>, scalar_prefetch = 0 : i64, scratch_operands = 0 : i64, tpu.core_type = #tpu.core_type<tc>, window_params = [{transform_indices = @transform_0, window_bounds = array<i64: 1, 2, 1552>}, {transform_indices = @transform_1, window_bounds = array<i64: 1, 1552, 256>}, {transform_indices = @transform_2, window_bounds = array<i64: 2, 256>}]} {
    %c0 = arith.constant 0 : index
    %c0_0 = arith.constant 0 : index
    %c0_1 = arith.constant 0 : index
    %0 = vector.load %arg1[%c0, %c0_0, %c0_1] : memref<1x2x1552xbf16, #tpu.memory_space<vmem>>, vector<1x2x1552xbf16>
    %1 = vector.shape_cast %0 : vector<1x2x1552xbf16> to vector<2x1552xbf16>
    %c0_2 = arith.constant 0 : index
    %c0_3 = arith.constant 0 : index
    %c0_4 = arith.constant 0 : index
    %2 = vector.load %arg2[%c0_2, %c0_3, %c0_4] : memref<1x1552x256xbf16, #tpu.memory_space<vmem>>, vector<1x1552x256xbf16>
    %3 = vector.shape_cast %2 : vector<1x1552x256xbf16> to vector<1552x256xbf16>
    %cst = arith.constant dense<0.000000e+00> : vector<2x256xf32>
    %4 = tpu.matmul %1, %3, %cst {dimension_numbers = #tpu.dot_dimension_numbers<[1], [0], [0], [1], [0, 0, 1, 1], [], []>} : vector<2x1552xbf16>, vector<1552x256xbf16>, vector<2x256xf32> -> vector<2x256xf32>
    %c0_5 = arith.constant 0 : index
    %c0_6 = arith.constant 0 : index
    %5 = vector.load %arg3[%c0_5, %c0_6] : memref<2x256xf32, #tpu.memory_space<vmem>>, vector<2x256xf32>
    tpu.vector_store %arg3[%c0_5, %c0_6], %4 {strides = array<i32>} : memref<2x256xf32, #tpu.memory_space<vmem>>, vector<2x256xf32>,
    return
  }
  func.func @transform_0(%arg0: i32) -> (i32, i32, i32) {
    %c0_i32 = arith.constant 0 : i32
    %c0_i32_0 = arith.constant 0 : i32
    %c0_i32_1 = arith.constant 0 : i32
    return %arg0, %c0_i32, %c0_i32_0 : i32, i32, i32
  }
  func.func @transform_1(%arg0: i32) -> (i32, i32, i32) {
    %c0_i32 = arith.constant 0 : i32
    %c0_i32_0 = arith.constant 0 : i32
    %c0_i32_1 = arith.constant 0 : i32
    return %arg0, %c0_i32, %c0_i32_0 : i32, i32, i32
  }
  func.func @transform_2(%arg0: i32) -> (i32, i32) {
    %c0_i32 = arith.constant 0 : i32
    %c0_i32_0 = arith.constant 0 : i32
    return %c0_i32, %arg0 : i32, i32
  }
}

</mosaic_0001>

<llo_original>
// kernel: tpu_custom_call.1
$region0: #{tpu_custom_call.1}
  #allocation0 [shape = 'u32[]', space=smem, size = 0x4, offset = 0x4, fixed_abs, tag = 'smem constant byte address 0x4 - core index']
  #allocation1 [shape = 'u32[72,128]{1,0:T(1,128)}', space=vmem, size = 0x9000, scoped, tag = 'internal scratch']
  %s0 = inlined_call_operand.hbm [shape: bf16[2,2,1552], index: 0, kind: input, shape index: {}]
  %s1 = inlined_call_operand.hbm [shape: bf16[2,1552,256], index: 1, kind: input, shape index: {}]
  %s2 = inlined_call_operand.hbm [shape: f32[2,512], index: 2, kind: output, shape index: {}]
  %s3 = sld [smem:[#allocation0]]
  $region49: #{tpu_custom_call.1} parent=0
    _
  %s5 = ssub.s32 1, %s3
  %s6 = scalar_select 0, %s5, %s3
  $region1: #{tpu_custom_call.1} parent=0
    #allocation2 [shape = 'u8[13312]{0}', space=vmem, size = 0x3400, scoped, tag = 'input window, operand 0']
    #allocation3 [shape = 's32[2]{0}', space=sflag, size = 0x8, scoped, tag = 'scoped memory for tpu_custom_call.1']
    #allocation4 [shape = 's32[2]{0}', space=sflag, size = 0x8, scoped, tag = 'scoped memory for tpu_custom_call.1']
    #allocation5 [shape = 'u8[1589248]{0}', space=vmem, size = 0x184000, scoped, tag = 'input window, operand 1']
    #allocation6 [shape = 's32[2]{0}', space=sflag, size = 0x8, scoped, tag = 'scoped memory for tpu_custom_call.1']
    #allocation7 [shape = 'u8[4096]{0}', space=vmem, size = 0x1000, scoped, tag = 'output window, operand 0']
    %7 = vsyncpa [#allocation3], 0
    %s8 = scalar_lea.sflag [#allocation3], 1
    %9 = vsyncpa %s8, 0
    %10 = vsyncpa [#allocation6], 0
    %s11 = scalar_lea.sflag [#allocation6], 1
    %12 = vsyncpa %s11, 0
    %13 = vsyncpa [#allocation4], 0
    %s14 = scalar_lea.sflag [#allocation4], 1
    %15 = vsyncpa %s14, 0
    loop: start=0, step=1, limit=4
    $region2: #{tpu_custom_call.1} parent=1 // loop_pre_header
      _
    $region3: #{tpu_custom_call.1} parent=1 // loop_header
      %s17 = sphi 0, %s21
      %p18 = scmp.ge.s32.totalorder %s17, 4
      %s27 = sphi 0, %s29
      %s30 = sphi 0, %s27
      %s31 = sphi 0, %s30
      %s47 = sphi 0, %s31
      %s53 = sphi 0, %s55
      %s56 = sphi 0, %s53
      %s57 = sphi 0, %s56
      %s73 = sphi 0, %s57
      %s79 = sphi 0, %s81
      %s82 = sphi 0, %s79
      %s83 = sphi 0, %s82
      %s99 = sphi 0, %s83
    $region4: #{tpu_custom_call.1} parent=1 // loop_header_branch
      %20 = sbr.rel (%p18) target = $region8
    $region5: #{tpu_custom_call.1} parent=1 // loop_body
      %s22 = ssub.s32 %s17, 1
      %s23 = ssub.s32 %s17, 2
      %s24 = sadd.s32 %s17, 1
      %s25 = ssub.s32 %s17, %s24
      %p26 = scmp.eq.s32.totalorder %s25, 0
      %s28 = sadd.s32 %s27, 1
      %s29 = scalar_select %p26, %s27, %s28
      %p32 = pneg %p26
      %p33 = scmp.eq.s32.totalorder %s17, 1
      %p34 = por %p32, %p33
      %p35 = scmp.ne.s32.totalorder %s27, %s30
      %p36 = scmp.eq.s32.totalorder %s17, 0
      %p37 = por %p35, %p36
      %p38 = scmp.ne.s32.totalorder %s27, %s30
      %p39 = scmp.eq.s32.totalorder %s22, 1
      %p40 = por %p38, %p39
      %p41 = scmp.ne.s32.totalorder %s30, %s31
      %p42 = scmp.eq.s32.totalorder %s22, 0
      %p43 = por %p41, %p42
      %p44 = scmp.ne.s32.totalorder %s30, %s31
      %p45 = scmp.eq.s32.totalorder %s23, 1
      %p46 = por %p44, %p45
      %p48 = scmp.ne.s32.totalorder %s31, %s47
      %p49 = scmp.eq.s32.totalorder %s23, 0
      %p50 = por %p48, %p49
      %s51 = ssub.s32 %s17, %s24
      %p52 = scmp.eq.s32.totalorder %s51, 0
      %s54 = sadd.s32 %s53, 1
      %s55 = scalar_select %p52, %s53, %s54
      %p58 = pneg %p52
      %p59 = scmp.eq.s32.totalorder %s17, 1
      %p60 = por %p58, %p59
      %p61 = scmp.ne.s32.totalorder %s53, %s56
      %p62 = scmp.eq.s32.totalorder %s17, 0
      %p63 = por %p61, %p62
      %p64 = scmp.ne.s32.totalorder %s53, %s56
      %p65 = scmp.eq.s32.totalorder %s22, 1
      %p66 = por %p64, %p65
      %p67 = scmp.ne.s32.totalorder %s56, %s57
      %p68 = scmp.eq.s32.totalorder %s22, 0
      %p69 = por %p67, %p68
      %p70 = scmp.ne.s32.totalorder %s56, %s57
      %p71 = scmp.eq.s32.totalorder %s23, 1
      %p72 = por %p70, %p71
      %p74 = scmp.ne.s32.totalorder %s57, %s73
      %p75 = scmp.eq.s32.totalorder %s23, 0
      %p76 = por %p74, %p75
      %s77 = ssub.s32 %s17, %s24
      %p78 = scmp.eq.s32.totalorder %s77, 0
      %s80 = sadd.s32 %s79, 1
      %s81 = scalar_select %p78, %s79, %s80
      %p84 = pneg %p78
      %p85 = scmp.eq.s32.totalorder %s17, 1
      %p86 = por %p84, %p85
      %p87 = scmp.ne.s32.totalorder %s79, %s82
      %p88 = scmp.eq.s32.totalorder %s17, 0
      %p89 = por %p87, %p88
      %p90 = scmp.ne.s32.totalorder %s79, %s82
      %p91 = scmp.eq.s32.totalorder %s22, 1
      %p92 = por %p90, %p91
      %p93 = scmp.ne.s32.totalorder %s82, %s83
      %p94 = scmp.eq.s32.totalorder %s22, 0
      %p95 = por %p93, %p94
      %p96 = scmp.ne.s32.totalorder %s82, %s83
      %p97 = scmp.eq.s32.totalorder %s23, 1
      %p98 = por %p96, %p97
      %p100 = scmp.ne.s32.totalorder %s83, %s99
      %p101 = scmp.eq.s32.totalorder %s23, 0
      %p102 = por %p100, %p101
      %p103 = scmp.le.s32.totalorder 1, %s17
      %p104 = scmp.lt.s32.totalorder %s17, 3
      %p105 = pnand %p103, %p104
      %p106 = pneg %p105
      // Predicated region
      $region9: #{tpu_custom_call.1} parent=5 // pred_check
        _
      $region10: #{tpu_custom_call.1} parent=5 // pred_check_branch
        %108 = sbr.rel (%p105) target = $region12
      $region11: #{tpu_custom_call.1} parent=5 // pred_region
        %s109 = ssub.s32 %s17, 1
      $region12: #{tpu_custom_call.1} parent=5 // pred_fallthru
        _
      %p110 = scmp.lt.s32.totalorder %s17, 2
      // Predicated region
      $region13: #{tpu_custom_call.1} parent=5 // pred_check
        %p111 = pneg %p110
      $region14: #{tpu_custom_call.1} parent=5 // pred_check_branch
        %113 = sbr.rel (%p111) target = $region16
      $region15: #{tpu_custom_call.1} parent=5 // pred_region
        // Predicated region
        $region17: #{tpu_custom_call.1} parent=15 // pred_check
          %p114 = pneg %p37
        $region18: #{tpu_custom_call.1} parent=15 // pred_check_branch
          %116 = sbr.rel (%p114) target = $region20
        $region19: #{tpu_custom_call.1} parent=15 // pred_region
          %s117 = sand.u32 %s27, 1
          %s118 = scalar_lea.sflag [#allocation3], %s117
          %s119 = sand.u32 %s27, 1
          %s120 = smul.addr %s119, 13
          %s121 = scalar_lea.vmem [#allocation2], %s120
          %123 = vsyncadd %s118, 0
          %s124 = smul.addr %s17, 13
          %s125 = scalar_lea.hbm %s0, %s124
          %s127 = sshll.u32 %s125, 4
          %s128 = int_to_ptr.hbm [resolvable:$true] %s127
          %s129 = sshll.u32 %s121, 4
          %s130 = int_to_ptr.vmem [resolvable:$true] %s129
          %132 = dma.hbm_to_vmem [thread:$0]  %s128, 208, %s130, %s118
        $region20: #{tpu_custom_call.1} parent=15 // pred_fallthru
          _
        // Predicated region
        $region21: #{tpu_custom_call.1} parent=15 // pred_check
          %p133 = pneg %p63
        $region22: #{tpu_custom_call.1} parent=15 // pred_check_branch
          %135 = sbr.rel (%p133) target = $region24
        $region23: #{tpu_custom_call.1} parent=15 // pred_region
          %s136 = sand.u32 %s53, 1
          %s137 = scalar_lea.sflag [#allocation6], %s136
          %s138 = sand.u32 %s53, 1
          %s139 = smul.addr %s138, 1552
          %s140 = scalar_lea.vmem [#allocation5], %s139
          %142 = vsyncadd %s137, 0
          %s143 = smul.addr %s17, 388
          %s144 = smul.addr %s143, 4
          %s145 = scalar_lea.hbm %s1, %s144
          %s146 = sshll.u32 %s145, 4
          %s147 = int_to_ptr.hbm [resolvable:$true] %s146
          %s148 = sshll.u32 %s140, 4
          %s149 = int_to_ptr.vmem [resolvable:$true] %s148
          %154 = dma.hbm_to_vmem [thread:$0]  %s147, 24832, %s149, %s137, 128, 128, 8
        $region24: #{tpu_custom_call.1} parent=15 // pred_fallthru
          _
      $region16: #{tpu_custom_call.1} parent=5 // pred_fallthru
        _
      %p155 = scmp.le.s32.totalorder 1, %s17
      %p156 = scmp.lt.s32.totalorder %s17, 3
      %p157 = pnand %p155, %p156
      %p158 = pneg %p157
      // Predicated region
      $region25: #{tpu_custom_call.1} parent=5 // pred_check
        _
      $region26: #{tpu_custom_call.1} parent=5 // pred_check_branch
        %160 = sbr.rel (%p157) target = $region28
      $region27: #{tpu_custom_call.1} parent=5 // pred_region
        %s161 = ssub.s32 %s17, 1
        %s162 = sand.u32 %s30, 1
        %s163 = scalar_lea.sflag [#allocation3], %s162
        %s164 = sand.u32 %s30, 1
        %s165 = smul.addr %s164, 13
        %s166 = scalar_lea.vmem [#allocation2], %s165
        // Predicated region
        $region29: #{tpu_custom_call.1} parent=27 // pred_check
          %p167 = pneg %p43
        $region30: #{tpu_custom_call.1} parent=27 // pred_check_branch
          %169 = sbr.rel (%p167) target = $region32
        $region31: #{tpu_custom_call.1} parent=27 // pred_region
          %171 = dma.done %s163, 208
        $region32: #{tpu_custom_call.1} parent=27 // pred_fallthru
          _
        %s172 = sand.u32 %s56, 1
        %s173 = scalar_lea.sflag [#allocation6], %s172
        %s174 = sand.u32 %s56, 1
        %s175 = smul.addr %s174, 1552
        %s176 = scalar_lea.vmem [#allocation5], %s175
        // Predicated region
        $region33: #{tpu_custom_call.1} parent=27 // pred_check
          %p177 = pneg %p69
        $region34: #{tpu_custom_call.1} parent=27 // pred_check_branch
          %179 = sbr.rel (%p177) target = $region36
        $region35: #{tpu_custom_call.1} parent=27 // pred_region
          %181 = dma.done %s173, 24832
        $region36: #{tpu_custom_call.1} parent=27 // pred_fallthru
          _
        %s182 = sand.u32 %s30, 1
        %s183 = scalar_lea.sflag [#allocation3], %s182
        %s184 = sand.u32 %s30, 1
        %s185 = smul.addr %s184, 13
        %s186 = scalar_lea.vmem [#allocation2], %s185
        %p187 = pneg %p43
        %p188 = pneg %p40
        %s189 = sand.u32 %s56, 1
        %s190 = scalar_lea.sflag [#allocation6], %s189
        %s191 = sand.u32 %s56, 1
        %s192 = smul.addr %s191, 1552
        %s193 = scalar_lea.vmem [#allocation5], %s192
        %p194 = pneg %p69
        %p195 = pneg %p66
        %p196 = pneg %p95
        %p197 = pneg %p92
        %s198 = sand.u32 %s82, 1
        %s199 = scalar_lea.sflag [#allocation4], %s198
        %s200 = sand.u32 %s82, 1
        %s201 = smul.addr %s200, 4
        %s202 = scalar_lea.vmem [#allocation7], %s201
        %s203 = smul.u32 2, %s22
        %v205 = vld [vmem:[%s166] sm:$0xff]
        %v206 = vld [vmem:[%s166 + $0x8] sm:$0x1f]
        %v207 = vld [vmem:[%s176] sm:$0xff]
        %v208 = vld [vmem:[%s176 + $0x8] sm:$0xff]
        %v209 = vld [vmem:[%s176 + $0x10] sm:$0xff]
        %v210 = vld [vmem:[%s176 + $0x18] sm:$0xff]
        %v211 = vld [vmem:[%s176 + $0x20] sm:$0xff]
        %v212 = vld [vmem:[%s176 + $0x28] sm:$0xff]
        %v213 = vld [vmem:[%s176 + $0x30] sm:$0xff]
        %v214 = vld [vmem:[%s176 + $0x38] sm:$0xff]
        %v215 = vld [vmem:[%s176 + $0x40] sm:$0xff]
        %v216 = vld [vmem:[%s176 + $0x48] sm:$0xff]
        %v217 = vld [vmem:[%s176 + $0x50] sm:$0xff]
        %v218 = vld [vmem:[%s176 + $0x58] sm:$0xff]
        %v219 = vld [vmem:[%s176 + $0x60] sm:$0xff]
        %v220 = vld [vmem:[%s176 + $0x68] sm:$0xff]
        %v221 = vld [vmem:[%s176 + $0x70] sm:$0xff]
        %v222 = vld [vmem:[%s176 + $0x78] sm:$0xff]
        %v223 = vld [vmem:[%s176 + $0x80] sm:$0xff]
        %v224 = vld [vmem:[%s176 + $0x88] sm:$0xff]
        %v225 = vld [vmem:[%s176 + $0x90] sm:$0xff]
        %v226 = vld [vmem:[%s176 + $0x98] sm:$0xff]
        %v227 = vld [vmem:[%s176 + $0xa0] sm:$0xff]
        %v228 = vld [vmem:[%s176 + $0xa8] sm:$0xff]
        %v229 = vld [vmem:[%s176 + $0xb0] sm:$0xff]
        %v230 = vld [vmem:[%s176 + $0xb8] sm:$0xff]
        %v231 = vld [vmem:[%s176 + $0xc0] sm:$0xff]
        %v232 = vld [vmem:[%s176 + $0xc8] sm:$0xff]
        %v233 = vld [vmem:[%s176 + $0xd0] sm:$0xff]
        %v234 = vld [vmem:[%s176 + $0xd8] sm:$0xff]
        %v235 = vld [vmem:[%s176 + $0xe0] sm:$0xff]
        %v236 = vld [vmem:[%s176 + $0xe8] sm:$0xff]
        %v237 = vld [vmem:[%s176 + $0xf0] sm:$0xff]
        %v238 = vld [vmem:[%s176 + $0xf8] sm:$0xff]
        %v239 = vld [vmem:[%s176 + $0x100] sm:$0xff]
        %v240 = vld [vmem:[%s176 + $0x108] sm:$0xff]
        %v241 = vld [vmem:[%s176 + $0x110] sm:$0xff]
        %v242 = vld [vmem:[%s176 + $0x118] sm:$0xff]
        %v243 = vld [vmem:[%s176 + $0x120] sm:$0xff]
        %v244 = vld [vmem:[%s176 + $0x128] sm:$0xff]
        %v245 = vld [vmem:[%s176 + $0x130] sm:$0xff]
        %v246 = vld [vmem:[%s176 + $0x138] sm:$0xff]
        %v247 = vld [vmem:[%s176 + $0x140] sm:$0xff]
        %v248 = vld [vmem:[%s176 + $0x148] sm:$0xff]
        %v249 = vld [vmem:[%s176 + $0x150] sm:$0xff]
        %v250 = vld [vmem:[%s176 + $0x158] sm:$0xff]
        %v251 = vld [vmem:[%s176 + $0x160] sm:$0xff]
        %v252 = vld [vmem:[%s176 + $0x168] sm:$0xff]
        %v253 = vld [vmem:[%s176 + $0x170] sm:$0xff]
        %v254 = vld [vmem:[%s176 + $0x178] sm:$0xff]
        %v255 = vld [vmem:[%s176 + $0x180] sm:$0xff]
        %v256 = vld [vmem:[%s176 + $0x188] sm:$0xff]
        %v257 = vld [vmem:[%s176 + $0x190] sm:$0xff]
        %v258 = vld [vmem:[%s176 + $0x198] sm:$0xff]
        %v259 = vld [vmem:[%s176 + $0x1a0] sm:$0xff]
        %v260 = vld [vmem:[%s176 + $0x1a8] sm:$0xff]
        %v261 = vld [vmem:[%s176 + $0x1b0] sm:$0xff]
        %v262 = vld [vmem:[%s176 + $0x1b8] sm:$0xff]
        %v263 = vld [vmem:[%s176 + $0x1c0] sm:$0xff]
        %v264 = vld [vmem:[%s176 + $0x1c8] sm:$0xff]
        %v265 = vld [vmem:[%s176 + $0x1d0] sm:$0xff]
        %v266 = vld [vmem:[%s176 + $0x1d8] sm:$0xff]
        %v267 = vld [vmem:[%s176 + $0x1e0] sm:$0xff]
        %v268 = vld [vmem:[%s176 + $0x1e8] sm:$0xff]
        %v269 = vld [vmem:[%s176 + $0x1f0] sm:$0xff]
        %v270 = vld [vmem:[%s176 + $0x1f8] sm:$0xff]
        %v271 = vld [vmem:[%s176 + $0x200] sm:$0xff]
        %v272 = vld [vmem:[%s176 + $0x208] sm:$0xff]
        %v273 = vld [vmem:[%s176 + $0x210] sm:$0xff]
        %v274 = vld [vmem:[%s176 + $0x218] sm:$0xff]
        %v275 = vld [vmem:[%s176 + $0x220] sm:$0xff]
        %v276 = vld [vmem:[%s176 + $0x228] sm:$0xff]
        %v277 = vld [vmem:[%s176 + $0x230] sm:$0xff]
        %v278 = vld [vmem:[%s176 + $0x238] sm:$0xff]
        %v279 = vld [vmem:[%s176 + $0x240] sm:$0xff]
        %v280 = vld [vmem:[%s176 + $0x248] sm:$0xff]
        %v281 = vld [vmem:[%s176 + $0x250] sm:$0xff]
        %v282 = vld [vmem:[%s176 + $0x258] sm:$0xff]
        %v283 = vld [vmem:[%s176 + $0x260] sm:$0xff]
        %v284 = vld [vmem:[%s176 + $0x268] sm:$0xff]
        %v285 = vld [vmem:[%s176 + $0x270] sm:$0xff]
        %v286 = vld [vmem:[%s176 + $0x278] sm:$0xff]
        %v287 = vld [vmem:[%s176 + $0x280] sm:$0xff]
        %v288 = vld [vmem:[%s176 + $0x288] sm:$0xff]
        %v289 = vld [vmem:[%s176 + $0x290] sm:$0xff]
        %v290 = vld [vmem:[%s176 + $0x298] sm:$0xff]
        %v291 = vld [vmem:[%s176 + $0x2a0] sm:$0xff]
        %v292 = vld [vmem:[%s176 + $0x2a8] sm:$0xff]
        %v293 = vld [vmem:[%s176 + $0x2b0] sm:$0xff]
        %v294 = vld [vmem:[%s176 + $0x2b8] sm:$0xff]
        %v295 = vld [vmem:[%s176 + $0x2c0] sm:$0xff]
        %v296 = vld [vmem:[%s176 + $0x2c8] sm:$0xff]
        %v297 = vld [vmem:[%s176 + $0x2d0] sm:$0xff]
        %v298 = vld [vmem:[%s176 + $0x2d8] sm:$0xff]
        %v299 = vld [vmem:[%s176 + $0x2e0] sm:$0xff]
        %v300 = vld [vmem:[%s176 + $0x2e8] sm:$0xff]
        %v301 = vld [vmem:[%s176 + $0x2f0] sm:$0xff]
        %v302 = vld [vmem:[%s176 + $0x2f8] sm:$0xff]
        %v303 = vld [vmem:[%s176 + $0x300] sm:$0xff]
        %v304 = vld [vmem:[%s176 + $0x308] sm:$0xff]
        %v305 = vld [vmem:[%s176 + $0x310] sm:$0xff]
        %v306 = vld [vmem:[%s176 + $0x318] sm:$0xff]
        %v307 = vld [vmem:[%s176 + $0x320] sm:$0xff]
        %v308 = vld [vmem:[%s176 + $0x328] sm:$0xff]
        %v309 = vld [vmem:[%s176 + $0x330] sm:$0xff]
        %v310 = vld [vmem:[%s176 + $0x338] sm:$0xff]
        %v311 = vld [vmem:[%s176 + $0x340] sm:$0xff]
        %v312 = vld [vmem:[%s176 + $0x348] sm:$0xff]
        %v313 = vld [vmem:[%s176 + $0x350] sm:$0xff]
        %v314 = vld [vmem:[%s176 + $0x358] sm:$0xff]
        %v315 = vld [vmem:[%s176 + $0x360] sm:$0xff]
        %v316 = vld [vmem:[%s176 + $0x368] sm:$0xff]
        %v317 = vld [vmem:[%s176 + $0x370] sm:$0xff]
        %v318 = vld [vmem:[%s176 + $0x378] sm:$0xff]
        %v319 = vld [vmem:[%s176 + $0x380] sm:$0xff]
        %v320 = vld [vmem:[%s176 + $0x388] sm:$0xff]
        %v321 = vld [vmem:[%s176 + $0x390] sm:$0xff]
        %v322 = vld [vmem:[%s176 + $0x398] sm:$0xff]
        %v323 = vld [vmem:[%s176 + $0x3a0] sm:$0xff]
        %v324 = vld [vmem:[%s176 + $0x3a8] sm:$0xff]
        %v325 = vld [vmem:[%s176 + $0x3b0] sm:$0xff]
        %v326 = vld [vmem:[%s176 + $0x3b8] sm:$0xff]
        %v327 = vld [vmem:[%s176 + $0x3c0] sm:$0xff]
        %v328 = vld [vmem:[%s176 + $0x3c8] sm:$0xff]
        %v329 = vld [vmem:[%s176 + $0x3d0] sm:$0xff]
        %v330 = vld [vmem:[%s176 + $0x3d8] sm:$0xff]
        %v331 = vld [vmem:[%s176 + $0x3e0] sm:$0xff]
        %v332 = vld [vmem:[%s176 + $0x3e8] sm:$0xff]
        %v333 = vld [vmem:[%s176 + $0x3f0] sm:$0xff]
        %v334 = vld [vmem:[%s176 + $0x3f8] sm:$0xff]
        %v335 = vld [vmem:[%s176 + $0x400] sm:$0xff]
        %v336 = vld [vmem:[%s176 + $0x408] sm:$0xff]
        %v337 = vld [vmem:[%s176 + $0x410] sm:$0xff]
        %v338 = vld [vmem:[%s176 + $0x418] sm:$0xff]
        %v339 = vld [vmem:[%s176 + $0x420] sm:$0xff]
        %v340 = vld [vmem:[%s176 + $0x428] sm:$0xff]
        %v341 = vld [vmem:[%s176 + $0x430] sm:$0xff]
        %v342 = vld [vmem:[%s176 + $0x438] sm:$0xff]
        %v343 = vld [vmem:[%s176 + $0x440] sm:$0xff]
        %v344 = vld [vmem:[%s176 + $0x448] sm:$0xff]
        %v345 = vld [vmem:[%s176 + $0x450] sm:$0xff]
        %v346 = vld [vmem:[%s176 + $0x458] sm:$0xff]
        %v347 = vld [vmem:[%s176 + $0x460] sm:$0xff]
        %v348 = vld [vmem:[%s176 + $0x468] sm:$0xff]
        %v349 = vld [vmem:[%s176 + $0x470] sm:$0xff]
        %v350 = vld [vmem:[%s176 + $0x478] sm:$0xff]
        %v351 = vld [vmem:[%s176 + $0x480] sm:$0xff]
        %v352 = vld [vmem:[%s176 + $0x488] sm:$0xff]
        %v353 = vld [vmem:[%s176 + $0x490] sm:$0xff]
        %v354 = vld [vmem:[%s176 + $0x498] sm:$0xff]
        %v355 = vld [vmem:[%s176 + $0x4a0] sm:$0xff]
        %v356 = vld [vmem:[%s176 + $0x4a8] sm:$0xff]
        %v357 = vld [vmem:[%s176 + $0x4b0] sm:$0xff]
        %v358 = vld [vmem:[%s176 + $0x4b8] sm:$0xff]
        %v359 = vld [vmem:[%s176 + $0x4c0] sm:$0xff]
        %v360 = vld [vmem:[%s176 + $0x4c8] sm:$0xff]
        %v361 = vld [vmem:[%s176 + $0x4d0] sm:$0xff]
        %v362 = vld [vmem:[%s176 + $0x4d8] sm:$0xff]
        %v363 = vld [vmem:[%s176 + $0x4e0] sm:$0xff]
        %v364 = vld [vmem:[%s176 + $0x4e8] sm:$0xff]
        %v365 = vld [vmem:[%s176 + $0x4f0] sm:$0xff]
        %v366 = vld [vmem:[%s176 + $0x4f8] sm:$0xff]
        %v367 = vld [vmem:[%s176 + $0x500] sm:$0xff]
        %v368 = vld [vmem:[%s176 + $0x508] sm:$0xff]
        %v369 = vld [vmem:[%s176 + $0x510] sm:$0xff]
        %v370 = vld [vmem:[%s176 + $0x518] sm:$0xff]
        %v371 = vld [vmem:[%s176 + $0x520] sm:$0xff]
        %v372 = vld [vmem:[%s176 + $0x528] sm:$0xff]
        %v373 = vld [vmem:[%s176 + $0x530] sm:$0xff]
        %v374 = vld [vmem:[%s176 + $0x538] sm:$0xff]
        %v375 = vld [vmem:[%s176 + $0x540] sm:$0xff]
        %v376 = vld [vmem:[%s176 + $0x548] sm:$0xff]
        %v377 = vld [vmem:[%s176 + $0x550] sm:$0xff]
        %v378 = vld [vmem:[%s176 + $0x558] sm:$0xff]
        %v379 = vld [vmem:[%s176 + $0x560] sm:$0xff]
        %v380 = vld [vmem:[%s176 + $0x568] sm:$0xff]
        %v381 = vld [vmem:[%s176 + $0x570] sm:$0xff]
        %v382 = vld [vmem:[%s176 + $0x578] sm:$0xff]
        %v383 = vld [vmem:[%s176 + $0x580] sm:$0xff]
        %v384 = vld [vmem:[%s176 + $0x588] sm:$0xff]
        %v385 = vld [vmem:[%s176 + $0x590] sm:$0xff]
        %v386 = vld [vmem:[%s176 + $0x598] sm:$0xff]
        %v387 = vld [vmem:[%s176 + $0x5a0] sm:$0xff]
        %v388 = vld [vmem:[%s176 + $0x5a8] sm:$0xff]
        %v389 = vld [vmem:[%s176 + $0x5b0] sm:$0xff]
        %v390 = vld [vmem:[%s176 + $0x5b8] sm:$0xff]
        %v391 = vld [vmem:[%s176 + $0x5c0] sm:$0xff]
        %v392 = vld [vmem:[%s176 + $0x5c8] sm:$0xff]
        %v393 = vld [vmem:[%s176 + $0x5d0] sm:$0xff]
        %v394 = vld [vmem:[%s176 + $0x5d8] sm:$0xff]
        %v395 = vld [vmem:[%s176 + $0x5e0] sm:$0xff]
        %v396 = vld [vmem:[%s176 + $0x5e8] sm:$0xff]
        %v397 = vld [vmem:[%s176 + $0x5f0] sm:$0xff]
        %v398 = vld [vmem:[%s176 + $0x5f8] sm:$0xff]
        %v399 = vld [vmem:[%s176 + $0x600] sm:$0xff]
        %v400 = vld [vmem:[%s176 + $0x608] sm:$0xff]
        %402 = vst [vmem:[#allocation1] ss:$9 sm:$0xff] %v205
        %v403 = vld [vmem:[#allocation1] sm:$0xff]
        %v404 = vld [vmem:[#allocation1 + $0x9] sm:$0xff]
        %v405 = vld [vmem:[#allocation1 + $0x12] sm:$0xff]
        %v406 = vld [vmem:[#allocation1 + $0x1b] sm:$0xff]
        %v407 = vld [vmem:[#allocation1 + $0x24] sm:$0xff]
        %v408 = vld [vmem:[#allocation1 + $0x2d] sm:$0xff]
        %v409 = vld [vmem:[#allocation1 + $0x36] sm:$0xff]
        %v410 = vld [vmem:[#allocation1 + $0x3f] sm:$0xff]
        %412 = vst [vmem:[#allocation1] ss:$9 sm:$0xff] %v206
        %v413 = vld [vmem:[#allocation1] sm:$0xff]
        %v414 = vld [vmem:[#allocation1 + $0x9] sm:$0xff]
        %v415 = vld [vmem:[#allocation1 + $0x12] sm:$0xff]
        %v416 = vld [vmem:[#allocation1 + $0x1b] sm:$0xff]
        %v417 = vld [vmem:[#allocation1 + $0x24] sm:$0xff]
        %v624 = vunpack.c.l.b16 %v207
        %v625 = vunpack.c.h.b16 %v207
        %v626 = vunpack.c.l.b16 %v208
        %v627 = vunpack.c.h.b16 %v208
        %v628 = vunpack.c.l.b16 %v209
        %v629 = vunpack.c.h.b16 %v209
        %v630 = vunpack.c.l.b16 %v210
        %v631 = vunpack.c.h.b16 %v210
        %v632 = vunpack.c.l.b16 %v211
        %v633 = vunpack.c.h.b16 %v211
        %v634 = vunpack.c.l.b16 %v212
        %v635 = vunpack.c.h.b16 %v212
        %v636 = vunpack.c.l.b16 %v213
        %v637 = vunpack.c.h.b16 %v213
        %v638 = vunpack.c.l.b16 %v214
        %v639 = vunpack.c.h.b16 %v214
        %v640 = vunpack.c.l.b16 %v215
        %v641 = vunpack.c.h.b16 %v215
        %v642 = vunpack.c.l.b16 %v216
        %v643 = vunpack.c.h.b16 %v216
        %v644 = vunpack.c.l.b16 %v217
        %v645 = vunpack.c.h.b16 %v217
        %v646 = vunpack.c.l.b16 %v218
        %v647 = vunpack.c.h.b16 %v218
        %v648 = vunpack.c.l.b16 %v219
        %v649 = vunpack.c.h.b16 %v219
        %v650 = vunpack.c.l.b16 %v220
        %v651 = vunpack.c.h.b16 %v220
        %v652 = vunpack.c.l.b16 %v221
        %v653 = vunpack.c.h.b16 %v221
        %v654 = vunpack.c.l.b16 %v222
        %v655 = vunpack.c.h.b16 %v222
        %v656 = vunpack.c.l.b16 %v223
        %v657 = vunpack.c.h.b16 %v223
        %v658 = vunpack.c.l.b16 %v224
        %v659 = vunpack.c.h.b16 %v224
        %v660 = vunpack.c.l.b16 %v225
        %v661 = vunpack.c.h.b16 %v225
        %v662 = vunpack.c.l.b16 %v226
        %v663 = vunpack.c.h.b16 %v226
        %v664 = vunpack.c.l.b16 %v227
        %v665 = vunpack.c.h.b16 %v227
        %v666 = vunpack.c.l.b16 %v228
        %v667 = vunpack.c.h.b16 %v228
        %v668 = vunpack.c.l.b16 %v229
        %v669 = vunpack.c.h.b16 %v229
        %v670 = vunpack.c.l.b16 %v230
        %v671 = vunpack.c.h.b16 %v230
        %v672 = vunpack.c.l.b16 %v231
        %v673 = vunpack.c.h.b16 %v231
        %v674 = vunpack.c.l.b16 %v232
        %v675 = vunpack.c.h.b16 %v232
        %v676 = vunpack.c.l.b16 %v233
        %v677 = vunpack.c.h.b16 %v233
        %v678 = vunpack.c.l.b16 %v234
        %v679 = vunpack.c.h.b16 %v234
        %v680 = vunpack.c.l.b16 %v235
        %v681 = vunpack.c.h.b16 %v235
        %v682 = vunpack.c.l.b16 %v236
        %v683 = vunpack.c.h.b16 %v236
        %v684 = vunpack.c.l.b16 %v237
        %v685 = vunpack.c.h.b16 %v237
        %v686 = vunpack.c.l.b16 %v238
        %v687 = vunpack.c.h.b16 %v238
        %v688 = vunpack.c.l.b16 %v239
        %v689 = vunpack.c.h.b16 %v239
        %v690 = vunpack.c.l.b16 %v240
        %v691 = vunpack.c.h.b16 %v240
        %v692 = vunpack.c.l.b16 %v241
        %v693 = vunpack.c.h.b16 %v241
        %v694 = vunpack.c.l.b16 %v242
        %v695 = vunpack.c.h.b16 %v242
        %v696 = vunpack.c.l.b16 %v243
        %v697 = vunpack.c.h.b16 %v243
        %v698 = vunpack.c.l.b16 %v244
        %v699 = vunpack.c.h.b16 %v244
        %v700 = vunpack.c.l.b16 %v245
        %v701 = vunpack.c.h.b16 %v245
        %v702 = vunpack.c.l.b16 %v246
        %v703 = vunpack.c.h.b16 %v246
        %v704 = vunpack.c.l.b16 %v247
        %v705 = vunpack.c.h.b16 %v247
        %v706 = vunpack.c.l.b16 %v248
        %v707 = vunpack.c.h.b16 %v248
        %v708 = vunpack.c.l.b16 %v249
        %v709 = vunpack.c.h.b16 %v249
        %v710 = vunpack.c.l.b16 %v250
        %v711 = vunpack.c.h.b16 %v250
        %v712 = vunpack.c.l.b16 %v251
        %v713 = vunpack.c.h.b16 %v251
        %v714 = vunpack.c.l.b16 %v252
        %v715 = vunpack.c.h.b16 %v252
        %v716 = vunpack.c.l.b16 %v253
        %v717 = vunpack.c.h.b16 %v253
        %v718 = vunpack.c.l.b16 %v254
        %v719 = vunpack.c.h.b16 %v254
        %v720 = vunpack.c.l.b16 %v255
        %v721 = vunpack.c.h.b16 %v255
        %v722 = vunpack.c.l.b16 %v256
        %v723 = vunpack.c.h.b16 %v256
        %v724 = vunpack.c.l.b16 %v257
        %v725 = vunpack.c.h.b16 %v257
        %v726 = vunpack.c.l.b16 %v258
        %v727 = vunpack.c.h.b16 %v258
        %v728 = vunpack.c.l.b16 %v259
        %v729 = vunpack.c.h.b16 %v259
        %v730 = vunpack.c.l.b16 %v260
        %v731 = vunpack.c.h.b16 %v260
        %v732 = vunpack.c.l.b16 %v261
        %v733 = vunpack.c.h.b16 %v261
        %v734 = vunpack.c.l.b16 %v262
        %v735 = vunpack.c.h.b16 %v262
        %v736 = vunpack.c.l.b16 %v263
        %v737 = vunpack.c.h.b16 %v263
        %v738 = vunpack.c.l.b16 %v264
        %v739 = vunpack.c.h.b16 %v264
        %v740 = vunpack.c.l.b16 %v265
        %v741 = vunpack.c.h.b16 %v265
        %v742 = vunpack.c.l.b16 %v266
        %v743 = vunpack.c.h.b16 %v266
        %v744 = vunpack.c.l.b16 %v267
        %v745 = vunpack.c.h.b16 %v267
        %v746 = vunpack.c.l.b16 %v268
        %v747 = vunpack.c.h.b16 %v268
        %v748 = vunpack.c.l.b16 %v269
        %v749 = vunpack.c.h.b16 %v269
        %v750 = vunpack.c.l.b16 %v270
        %v751 = vunpack.c.h.b16 %v270
        %v752 = vunpack.c.l.b16 %v271
        %v753 = vunpack.c.h.b16 %v271
        %v754 = vunpack.c.l.b16 %v272
        %v755 = vunpack.c.h.b16 %v272
        %v756 = vunpack.c.l.b16 %v273
        %v757 = vunpack.c.h.b16 %v273
        %v758 = vunpack.c.l.b16 %v274
        %v759 = vunpack.c.h.b16 %v274
        %v760 = vunpack.c.l.b16 %v275
        %v761 = vunpack.c.h.b16 %v275
        %v762 = vunpack.c.l.b16 %v276
        %v763 = vunpack.c.h.b16 %v276
        %v764 = vunpack.c.l.b16 %v277
        %v765 = vunpack.c.h.b16 %v277
        %v766 = vunpack.c.l.b16 %v278
        %v767 = vunpack.c.h.b16 %v278
        %v768 = vunpack.c.l.b16 %v279
        %v769 = vunpack.c.h.b16 %v279
        %v770 = vunpack.c.l.b16 %v280
        %v771 = vunpack.c.h.b16 %v280
        %v772 = vunpack.c.l.b16 %v281
        %v773 = vunpack.c.h.b16 %v281
        %v774 = vunpack.c.l.b16 %v282
        %v775 = vunpack.c.h.b16 %v282
        %v776 = vunpack.c.l.b16 %v283
        %v777 = vunpack.c.h.b16 %v283
        %v778 = vunpack.c.l.b16 %v284
        %v779 = vunpack.c.h.b16 %v284
        %v780 = vunpack.c.l.b16 %v285
        %v781 = vunpack.c.h.b16 %v285
        %v782 = vunpack.c.l.b16 %v286
        %v783 = vunpack.c.h.b16 %v286
        %v784 = vunpack.c.l.b16 %v287
        %v785 = vunpack.c.h.b16 %v287
        %v786 = vunpack.c.l.b16 %v288
        %v787 = vunpack.c.h.b16 %v288
        %v788 = vunpack.c.l.b16 %v289
        %v789 = vunpack.c.h.b16 %v289
        %v790 = vunpack.c.l.b16 %v290
        %v791 = vunpack.c.h.b16 %v290
        %v792 = vunpack.c.l.b16 %v291
        %v793 = vunpack.c.h.b16 %v291
        %v794 = vunpack.c.l.b16 %v292
        %v795 = vunpack.c.h.b16 %v292
        %v796 = vunpack.c.l.b16 %v293
        %v797 = vunpack.c.h.b16 %v293
        %v798 = vunpack.c.l.b16 %v294
        %v799 = vunpack.c.h.b16 %v294
        %v800 = vunpack.c.l.b16 %v295
        %v801 = vunpack.c.h.b16 %v295
        %v802 = vunpack.c.l.b16 %v296
        %v803 = vunpack.c.h.b16 %v296
        %v804 = vunpack.c.l.b16 %v297
        %v805 = vunpack.c.h.b16 %v297
        %v806 = vunpack.c.l.b16 %v298
        %v807 = vunpack.c.h.b16 %v298
        %v808 = vunpack.c.l.b16 %v299
        %v809 = vunpack.c.h.b16 %v299
        %v810 = vunpack.c.l.b16 %v300
        %v811 = vunpack.c.h.b16 %v300
        %v812 = vunpack.c.l.b16 %v301
        %v813 = vunpack.c.h.b16 %v301
        %v814 = vunpack.c.l.b16 %v302
        %v815 = vunpack.c.h.b16 %v302
        %v816 = vunpack.c.l.b16 %v303
        %v817 = vunpack.c.h.b16 %v303
        %v818 = vunpack.c.l.b16 %v304
        %v819 = vunpack.c.h.b16 %v304
        %v820 = vunpack.c.l.b16 %v305
        %v821 = vunpack.c.h.b16 %v305
        %v822 = vunpack.c.l.b16 %v306
        %v823 = vunpack.c.h.b16 %v306
        %v824 = vunpack.c.l.b16 %v307
        %v825 = vunpack.c.h.b16 %v307
        %v826 = vunpack.c.l.b16 %v308
        %v827 = vunpack.c.h.b16 %v308
        %v828 = vunpack.c.l.b16 %v309
        %v829 = vunpack.c.h.b16 %v309
        %v830 = vunpack.c.l.b16 %v310
        %v831 = vunpack.c.h.b16 %v310
        %v832 = vunpack.c.l.b16 %v311
        %v833 = vunpack.c.h.b16 %v311
        %v834 = vunpack.c.l.b16 %v312
        %v835 = vunpack.c.h.b16 %v312
        %v836 = vunpack.c.l.b16 %v313
        %v837 = vunpack.c.h.b16 %v313
        %v838 = vunpack.c.l.b16 %v314
        %v839 = vunpack.c.h.b16 %v314
        %v840 = vunpack.c.l.b16 %v315
        %v841 = vunpack.c.h.b16 %v315
        %v842 = vunpack.c.l.b16 %v316
        %v843 = vunpack.c.h.b16 %v316
        %v844 = vunpack.c.l.b16 %v317
        %v845 = vunpack.c.h.b16 %v317
        %v846 = vunpack.c.l.b16 %v318
        %v847 = vunpack.c.h.b16 %v318
        %v848 = vunpack.c.l.b16 %v319
        %v849 = vunpack.c.h.b16 %v319
        %v850 = vunpack.c.l.b16 %v320
        %v851 = vunpack.c.h.b16 %v320
        %v852 = vunpack.c.l.b16 %v321
        %v853 = vunpack.c.h.b16 %v321
        %v854 = vunpack.c.l.b16 %v322
        %v855 = vunpack.c.h.b16 %v322
        %v856 = vunpack.c.l.b16 %v323
        %v857 = vunpack.c.h.b16 %v323
        %v858 = vunpack.c.l.b16 %v324
        %v859 = vunpack.c.h.b16 %v324
        %v860 = vunpack.c.l.b16 %v325
        %v861 = vunpack.c.h.b16 %v325
        %v862 = vunpack.c.l.b16 %v326
        %v863 = vunpack.c.h.b16 %v326
        %v864 = vunpack.c.l.b16 %v327
        %v865 = vunpack.c.h.b16 %v327
        %v866 = vunpack.c.l.b16 %v328
        %v867 = vunpack.c.h.b16 %v328
        %v868 = vunpack.c.l.b16 %v329
        %v869 = vunpack.c.h.b16 %v329
        %v870 = vunpack.c.l.b16 %v330
        %v871 = vunpack.c.h.b16 %v330
        %v872 = vunpack.c.l.b16 %v331
        %v873 = vunpack.c.h.b16 %v331
        %v874 = vunpack.c.l.b16 %v332
        %v875 = vunpack.c.h.b16 %v332
        %v876 = vunpack.c.l.b16 %v333
        %v877 = vunpack.c.h.b16 %v333
        %v878 = vunpack.c.l.b16 %v334
        %v879 = vunpack.c.h.b16 %v334
        %v880 = vunpack.c.l.b16 %v335
        %v881 = vunpack.c.h.b16 %v335
        %v882 = vunpack.c.l.b16 %v336
        %v883 = vunpack.c.h.b16 %v336
        %v884 = vunpack.c.l.b16 %v337
        %v885 = vunpack.c.h.b16 %v337
        %v886 = vunpack.c.l.b16 %v338
        %v887 = vunpack.c.h.b16 %v338
        %v888 = vunpack.c.l.b16 %v339
        %v889 = vunpack.c.h.b16 %v339
        %v890 = vunpack.c.l.b16 %v340
        %v891 = vunpack.c.h.b16 %v340
        %v892 = vunpack.c.l.b16 %v341
        %v893 = vunpack.c.h.b16 %v341
        %v894 = vunpack.c.l.b16 %v342
        %v895 = vunpack.c.h.b16 %v342
        %v896 = vunpack.c.l.b16 %v343
        %v897 = vunpack.c.h.b16 %v343
        %v898 = vunpack.c.l.b16 %v344
        %v899 = vunpack.c.h.b16 %v344
        %v900 = vunpack.c.l.b16 %v345
        %v901 = vunpack.c.h.b16 %v345
        %v902 = vunpack.c.l.b16 %v346
        %v903 = vunpack.c.h.b16 %v346
        %v904 = vunpack.c.l.b16 %v347
        %v905 = vunpack.c.h.b16 %v347
        %v906 = vunpack.c.l.b16 %v348
        %v907 = vunpack.c.h.b16 %v348
        %v908 = vunpack.c.l.b16 %v349
        %v909 = vunpack.c.h.b16 %v349
        %v910 = vunpack.c.l.b16 %v350
        %v911 = vunpack.c.h.b16 %v350
        %v912 = vunpack.c.l.b16 %v351
        %v913 = vunpack.c.h.b16 %v351
        %v914 = vunpack.c.l.b16 %v352
        %v915 = vunpack.c.h.b16 %v352
        %v916 = vunpack.c.l.b16 %v353
        %v917 = vunpack.c.h.b16 %v353
        %v918 = vunpack.c.l.b16 %v354
        %v919 = vunpack.c.h.b16 %v354
        %v920 = vunpack.c.l.b16 %v355
        %v921 = vunpack.c.h.b16 %v355
        %v922 = vunpack.c.l.b16 %v356
        %v923 = vunpack.c.h.b16 %v356
        %v924 = vunpack.c.l.b16 %v357
        %v925 = vunpack.c.h.b16 %v357
        %v926 = vunpack.c.l.b16 %v358
        %v927 = vunpack.c.h.b16 %v358
        %v928 = vunpack.c.l.b16 %v359
        %v929 = vunpack.c.h.b16 %v359
        %v930 = vunpack.c.l.b16 %v360
        %v931 = vunpack.c.h.b16 %v360
        %v932 = vunpack.c.l.b16 %v361
        %v933 = vunpack.c.h.b16 %v361
        %v934 = vunpack.c.l.b16 %v362
        %v935 = vunpack.c.h.b16 %v362
        %v936 = vunpack.c.l.b16 %v363
        %v937 = vunpack.c.h.b16 %v363
        %v938 = vunpack.c.l.b16 %v364
        %v939 = vunpack.c.h.b16 %v364
        %v940 = vunpack.c.l.b16 %v365
        %v941 = vunpack.c.h.b16 %v365
        %v942 = vunpack.c.l.b16 %v366
        %v943 = vunpack.c.h.b16 %v366
        %v944 = vunpack.c.l.b16 %v367
        %v945 = vunpack.c.h.b16 %v367
        %v946 = vunpack.c.l.b16 %v368
        %v947 = vunpack.c.h.b16 %v368
        %v948 = vunpack.c.l.b16 %v369
        %v949 = vunpack.c.h.b16 %v369
        %v950 = vunpack.c.l.b16 %v370
        %v951 = vunpack.c.h.b16 %v370
        %v952 = vunpack.c.l.b16 %v371
        %v953 = vunpack.c.h.b16 %v371
        %v954 = vunpack.c.l.b16 %v372
        %v955 = vunpack.c.h.b16 %v372
        %v956 = vunpack.c.l.b16 %v373
        %v957 = vunpack.c.h.b16 %v373
        %v958 = vunpack.c.l.b16 %v374
        %v959 = vunpack.c.h.b16 %v374
        %v960 = vunpack.c.l.b16 %v375
        %v961 = vunpack.c.h.b16 %v375
        %v962 = vunpack.c.l.b16 %v376
        %v963 = vunpack.c.h.b16 %v376
        %v964 = vunpack.c.l.b16 %v377
        %v965 = vunpack.c.h.b16 %v377
        %v966 = vunpack.c.l.b16 %v378
        %v967 = vunpack.c.h.b16 %v378
        %v968 = vunpack.c.l.b16 %v379
        %v969 = vunpack.c.h.b16 %v379
        %v970 = vunpack.c.l.b16 %v380
        %v971 = vunpack.c.h.b16 %v380
        %v972 = vunpack.c.l.b16 %v381
        %v973 = vunpack.c.h.b16 %v381
        %v974 = vunpack.c.l.b16 %v382
        %v975 = vunpack.c.h.b16 %v382
        %v976 = vunpack.c.l.b16 %v383
        %v977 = vunpack.c.h.b16 %v383
        %v978 = vunpack.c.l.b16 %v384
        %v979 = vunpack.c.h.b16 %v384
        %v980 = vunpack.c.l.b16 %v385
        %v981 = vunpack.c.h.b16 %v385
        %v982 = vunpack.c.l.b16 %v386
        %v983 = vunpack.c.h.b16 %v386
        %v984 = vunpack.c.l.b16 %v387
        %v985 = vunpack.c.h.b16 %v387
        %v986 = vunpack.c.l.b16 %v388
        %v987 = vunpack.c.h.b16 %v388
        %v988 = vunpack.c.l.b16 %v389
        %v989 = vunpack.c.h.b16 %v389
        %v990 = vunpack.c.l.b16 %v390
        %v991 = vunpack.c.h.b16 %v390
        %v992 = vunpack.c.l.b16 %v391
        %v993 = vunpack.c.h.b16 %v391
        %v994 = vunpack.c.l.b16 %v392
        %v995 = vunpack.c.h.b16 %v392
        %v996 = vunpack.c.l.b16 %v393
        %v997 = vunpack.c.h.b16 %v393
        %v998 = vunpack.c.l.b16 %v394
        %v999 = vunpack.c.h.b16 %v394
        %v1000 = vunpack.c.l.b16 %v395
        %v1001 = vunpack.c.h.b16 %v395
        %v1002 = vunpack.c.l.b16 %v396
        %v1003 = vunpack.c.h.b16 %v396
        %v1004 = vunpack.c.l.b16 %v397
        %v1005 = vunpack.c.h.b16 %v397
        %v1006 = vunpack.c.l.b16 %v398
        %v1007 = vunpack.c.h.b16 %v398
        %v1008 = vunpack.c.l.b16 %v399
        %v1009 = vunpack.c.h.b16 %v399
        %v1010 = vunpack.c.l.b16 %v400
        %v1011 = vunpack.c.h.b16 %v400
        %v1012 = vpack.c.b16 %v626, %v624
        %v1013 = vpack.c.b16 %v627, %v625
        %v1014 = vpack.c.b16 %v630, %v628
        %v1015 = vpack.c.b16 %v631, %v629
        %v1016 = vpack.c.b16 %v634, %v632
        %v1017 = vpack.c.b16 %v635, %v633
        %v1018 = vpack.c.b16 %v638, %v636
        %v1019 = vpack.c.b16 %v639, %v637
        %v1020 = vpack.c.b16 %v642, %v640
        %v1021 = vpack.c.b16 %v643, %v641
        %v1022 = vpack.c.b16 %v646, %v644
        %v1023 = vpack.c.b16 %v647, %v645
        %v1024 = vpack.c.b16 %v650, %v648
        %v1025 = vpack.c.b16 %v651, %v649
        %v1026 = vpack.c.b16 %v654, %v652
        %v1027 = vpack.c.b16 %v655, %v653
        %v1028 = vpack.c.b16 %v658, %v656
        %v1029 = vpack.c.b16 %v659, %v657
        %v1030 = vpack.c.b16 %v662, %v660
        %v1031 = vpack.c.b16 %v663, %v661
        %v1032 = vpack.c.b16 %v666, %v664
        %v1033 = vpack.c.b16 %v667, %v665
        %v1034 = vpack.c.b16 %v670, %v668
        %v1035 = vpack.c.b16 %v671, %v669
        %v1036 = vpack.c.b16 %v674, %v672
        %v1037 = vpack.c.b16 %v675, %v673
        %v1038 = vpack.c.b16 %v678, %v676
        %v1039 = vpack.c.b16 %v679, %v677
        %v1040 = vpack.c.b16 %v682, %v680
        %v1041 = vpack.c.b16 %v683, %v681
        %v1042 = vpack.c.b16 %v686, %v684
        %v1043 = vpack.c.b16 %v687, %v685
        %v1044 = vpack.c.b16 %v690, %v688
        %v1045 = vpack.c.b16 %v691, %v689
        %v1046 = vpack.c.b16 %v694, %v692
        %v1047 = vpack.c.b16 %v695, %v693
        %v1048 = vpack.c.b16 %v698, %v696
        %v1049 = vpack.c.b16 %v699, %v697
        %v1050 = vpack.c.b16 %v702, %v700
        %v1051 = vpack.c.b16 %v703, %v701
        %v1052 = vpack.c.b16 %v706, %v704
        %v1053 = vpack.c.b16 %v707, %v705
        %v1054 = vpack.c.b16 %v710, %v708
        %v1055 = vpack.c.b16 %v711, %v709
        %v1056 = vpack.c.b16 %v714, %v712
        %v1057 = vpack.c.b16 %v715, %v713
        %v1058 = vpack.c.b16 %v718, %v716
        %v1059 = vpack.c.b16 %v719, %v717
        %v1060 = vpack.c.b16 %v722, %v720
        %v1061 = vpack.c.b16 %v723, %v721
        %v1062 = vpack.c.b16 %v726, %v724
        %v1063 = vpack.c.b16 %v727, %v725
        %v1064 = vpack.c.b16 %v730, %v728
        %v1065 = vpack.c.b16 %v731, %v729
        %v1066 = vpack.c.b16 %v734, %v732
        %v1067 = vpack.c.b16 %v735, %v733
        %v1068 = vpack.c.b16 %v738, %v736
        %v1069 = vpack.c.b16 %v739, %v737
        %v1070 = vpack.c.b16 %v742, %v740
        %v1071 = vpack.c.b16 %v743, %v741
        %v1072 = vpack.c.b16 %v746, %v744
        %v1073 = vpack.c.b16 %v747, %v745
        %v1074 = vpack.c.b16 %v750, %v748
        %v1075 = vpack.c.b16 %v751, %v749
        %v1076 = vpack.c.b16 %v754, %v752
        %v1077 = vpack.c.b16 %v755, %v753
        %v1078 = vpack.c.b16 %v758, %v756
        %v1079 = vpack.c.b16 %v759, %v757
        %v1080 = vpack.c.b16 %v762, %v760
        %v1081 = vpack.c.b16 %v763, %v761
        %v1082 = vpack.c.b16 %v766, %v764
        %v1083 = vpack.c.b16 %v767, %v765
        %v1084 = vpack.c.b16 %v770, %v768
        %v1085 = vpack.c.b16 %v771, %v769
        %v1086 = vpack.c.b16 %v774, %v772
        %v1087 = vpack.c.b16 %v775, %v773
        %v1088 = vpack.c.b16 %v778, %v776
        %v1089 = vpack.c.b16 %v779, %v777
        %v1090 = vpack.c.b16 %v782, %v780
        %v1091 = vpack.c.b16 %v783, %v781
        %v1092 = vpack.c.b16 %v786, %v784
        %v1093 = vpack.c.b16 %v787, %v785
        %v1094 = vpack.c.b16 %v790, %v788
        %v1095 = vpack.c.b16 %v791, %v789
        %v1096 = vpack.c.b16 %v794, %v792
        %v1097 = vpack.c.b16 %v795, %v793
        %v1098 = vpack.c.b16 %v798, %v796
        %v1099 = vpack.c.b16 %v799, %v797
        %v1100 = vpack.c.b16 %v802, %v800
        %v1101 = vpack.c.b16 %v803, %v801
        %v1102 = vpack.c.b16 %v806, %v804
        %v1103 = vpack.c.b16 %v807, %v805
        %v1104 = vpack.c.b16 %v810, %v808
        %v1105 = vpack.c.b16 %v811, %v809
        %v1106 = vpack.c.b16 %v814, %v812
        %v1107 = vpack.c.b16 %v815, %v813
        %v1108 = vpack.c.b16 %v818, %v816
        %v1109 = vpack.c.b16 %v819, %v817
        %v1110 = vpack.c.b16 %v822, %v820
        %v1111 = vpack.c.b16 %v823, %v821
        %v1112 = vpack.c.b16 %v826, %v824
        %v1113 = vpack.c.b16 %v827, %v825
        %v1114 = vpack.c.b16 %v830, %v828
        %v1115 = vpack.c.b16 %v831, %v829
        %v1116 = vpack.c.b16 %v834, %v832
        %v1117 = vpack.c.b16 %v835, %v833
        %v1118 = vpack.c.b16 %v838, %v836
        %v1119 = vpack.c.b16 %v839, %v837
        %v1120 = vpack.c.b16 %v842, %v840
        %v1121 = vpack.c.b16 %v843, %v841
        %v1122 = vpack.c.b16 %v846, %v844
        %v1123 = vpack.c.b16 %v847, %v845
        %v1124 = vpack.c.b16 %v850, %v848
        %v1125 = vpack.c.b16 %v851, %v849
        %v1126 = vpack.c.b16 %v854, %v852
        %v1127 = vpack.c.b16 %v855, %v853
        %v1128 = vpack.c.b16 %v858, %v856
        %v1129 = vpack.c.b16 %v859, %v857
        %v1130 = vpack.c.b16 %v862, %v860
        %v1131 = vpack.c.b16 %v863, %v861
        %v1132 = vpack.c.b16 %v866, %v864
        %v1133 = vpack.c.b16 %v867, %v865
        %v1134 = vpack.c.b16 %v870, %v868
        %v1135 = vpack.c.b16 %v871, %v869
        %v1136 = vpack.c.b16 %v874, %v872
        %v1137 = vpack.c.b16 %v875, %v873
        %v1138 = vpack.c.b16 %v878, %v876
        %v1139 = vpack.c.b16 %v879, %v877
        %v1140 = vpack.c.b16 %v882, %v880
        %v1141 = vpack.c.b16 %v883, %v881
        %v1142 = vpack.c.b16 %v886, %v884
        %v1143 = vpack.c.b16 %v887, %v885
        %v1144 = vpack.c.b16 %v890, %v888
        %v1145 = vpack.c.b16 %v891, %v889
        %v1146 = vpack.c.b16 %v894, %v892
        %v1147 = vpack.c.b16 %v895, %v893
        %v1148 = vpack.c.b16 %v898, %v896
        %v1149 = vpack.c.b16 %v899, %v897
        %v1150 = vpack.c.b16 %v902, %v900
        %v1151 = vpack.c.b16 %v903, %v901
        %v1152 = vpack.c.b16 %v906, %v904
        %v1153 = vpack.c.b16 %v907, %v905
        %v1154 = vpack.c.b16 %v910, %v908
        %v1155 = vpack.c.b16 %v911, %v909
        %v1156 = vpack.c.b16 %v914, %v912
        %v1157 = vpack.c.b16 %v915, %v913
        %v1158 = vpack.c.b16 %v918, %v916
        %v1159 = vpack.c.b16 %v919, %v917
        %v1160 = vpack.c.b16 %v922, %v920
        %v1161 = vpack.c.b16 %v923, %v921
        %v1162 = vpack.c.b16 %v926, %v924
        %v1163 = vpack.c.b16 %v927, %v925
        %v1164 = vpack.c.b16 %v930, %v928
        %v1165 = vpack.c.b16 %v931, %v929
        %v1166 = vpack.c.b16 %v934, %v932
        %v1167 = vpack.c.b16 %v935, %v933
        %v1168 = vpack.c.b16 %v938, %v936
        %v1169 = vpack.c.b16 %v939, %v937
        %v1170 = vpack.c.b16 %v942, %v940
        %v1171 = vpack.c.b16 %v943, %v941
        %v1172 = vpack.c.b16 %v946, %v944
        %v1173 = vpack.c.b16 %v947, %v945
        %v1174 = vpack.c.b16 %v950, %v948
        %v1175 = vpack.c.b16 %v951, %v949
        %v1176 = vpack.c.b16 %v954, %v952
        %v1177 = vpack.c.b16 %v955, %v953
        %v1178 = vpack.c.b16 %v958, %v956
        %v1179 = vpack.c.b16 %v959, %v957
        %v1180 = vpack.c.b16 %v962, %v960
        %v1181 = vpack.c.b16 %v963, %v961
        %v1182 = vpack.c.b16 %v966, %v964
        %v1183 = vpack.c.b16 %v967, %v965
        %v1184 = vpack.c.b16 %v970, %v968
        %v1185 = vpack.c.b16 %v971, %v969
        %v1186 = vpack.c.b16 %v974, %v972
        %v1187 = vpack.c.b16 %v975, %v973
        %v1188 = vpack.c.b16 %v978, %v976
        %v1189 = vpack.c.b16 %v979, %v977
        %v1190 = vpack.c.b16 %v982, %v980
        %v1191 = vpack.c.b16 %v983, %v981
        %v1192 = vpack.c.b16 %v986, %v984
        %v1193 = vpack.c.b16 %v987, %v985
        %v1194 = vpack.c.b16 %v990, %v988
        %v1195 = vpack.c.b16 %v991, %v989
        %v1196 = vpack.c.b16 %v994, %v992
        %v1197 = vpack.c.b16 %v995, %v993
        %v1198 = vpack.c.b16 %v998, %v996
        %v1199 = vpack.c.b16 %v999, %v997
        %v1200 = vpack.c.b16 %v1002, %v1000
        %v1201 = vpack.c.b16 %v1003, %v1001
        %v1202 = vpack.c.b16 %v1006, %v1004
        %v1203 = vpack.c.b16 %v1007, %v1005
        %v1204 = vpack.c.b16 %v1010, %v1008
        %v1205 = vpack.c.b16 %v1011, %v1009
        %vm1400 = vcmask 130048
        %v1401 = vsel %vm1400, %v417, 0
        %1403 = vmatpush.bf16.msra.mxu0 %v1026
        %1404 = vmatpush.bf16.msra.mxu0 %v1024
        %1405 = vmatpush.bf16.msra.mxu0 %v1022
        %1406 = vmatpush.bf16.msra.mxu0 %v1020
        %1407 = vmatpush.bf16.msra.mxu0 %v1018
        %1408 = vmatpush.bf16.msra.mxu0 %v1016
        %1409 = vmatpush.bf16.msra.mxu0 %v1014
        %1410 = vmatpush.bf16.msra.mxu0 %v1012
        %1411 = vmatmul.bf16.gmra.mxu0 %v403
        %v1412 = vpop.f32.mrf.mxu0
        %v1413 = vadd.f32 0.0, %v1412
        %v1414 = vpop.f32.mrf.mxu0
        %1415 = vdwg.mxu0
        %1416 = vmatpush.bf16.msra.mxu0 %v1042
        %1417 = vmatpush.bf16.msra.mxu0 %v1040
        %1418 = vmatpush.bf16.msra.mxu0 %v1038
        %1419 = vmatpush.bf16.msra.mxu0 %v1036
        %1420 = vmatpush.bf16.msra.mxu0 %v1034
        %1421 = vmatpush.bf16.msra.mxu0 %v1032
        %1422 = vmatpush.bf16.msra.mxu0 %v1030
        %1423 = vmatpush.bf16.msra.mxu0 %v1028
        %1424 = vmatmul.bf16.gmra.mxu0 %v404
        %v1425 = vpop.f32.mrf.mxu0
        %v1426 = vadd.f32 %v1413, %v1425
        %v1427 = vpop.f32.mrf.mxu0
        %1428 = vdwg.mxu0
        %1429 = vmatpush.bf16.msra.mxu0 %v1058
        %1430 = vmatpush.bf16.msra.mxu0 %v1056
        %1431 = vmatpush.bf16.msra.mxu0 %v1054
        %1432 = vmatpush.bf16.msra.mxu0 %v1052
        %1433 = vmatpush.bf16.msra.mxu0 %v1050
        %1434 = vmatpush.bf16.msra.mxu0 %v1048
        %1435 = vmatpush.bf16.msra.mxu0 %v1046
        %1436 = vmatpush.bf16.msra.mxu0 %v1044
        %1437 = vmatmul.bf16.gmra.mxu0 %v405
        %v1438 = vpop.f32.mrf.mxu0
        %v1439 = vadd.f32 %v1426, %v1438
        %v1440 = vpop.f32.mrf.mxu0
        %1441 = vdwg.mxu0
        %1442 = vmatpush.bf16.msra.mxu0 %v1074
        %1443 = vmatpush.bf16.msra.mxu0 %v1072
        %1444 = vmatpush.bf16.msra.mxu0 %v1070
        %1445 = vmatpush.bf16.msra.mxu0 %v1068
        %1446 = vmatpush.bf16.msra.mxu0 %v1066
        %1447 = vmatpush.bf16.msra.mxu0 %v1064
        %1448 = vmatpush.bf16.msra.mxu0 %v1062
        %1449 = vmatpush.bf16.msra.mxu0 %v1060
        %1450 = vmatmul.bf16.gmra.mxu0 %v406
        %v1451 = vpop.f32.mrf.mxu0
        %v1452 = vadd.f32 %v1439, %v1451
        %v1453 = vpop.f32.mrf.mxu0
        %1454 = vdwg.mxu0
        %1455 = vmatpush.bf16.msra.mxu0 %v1090
        %1456 = vmatpush.bf16.msra.mxu0 %v1088
        %1457 = vmatpush.bf16.msra.mxu0 %v1086
        %1458 = vmatpush.bf16.msra.mxu0 %v1084
        %1459 = vmatpush.bf16.msra.mxu0 %v1082
        %1460 = vmatpush.bf16.msra.mxu0 %v1080
        %1461 = vmatpush.bf16.msra.mxu0 %v1078
        %1462 = vmatpush.bf16.msra.mxu0 %v1076
        %1463 = vmatmul.bf16.gmra.mxu0 %v407
        %v1464 = vpop.f32.mrf.mxu0
        %v1465 = vadd.f32 %v1452, %v1464
        %v1466 = vpop.f32.mrf.mxu0
        %1467 = vdwg.mxu0
        %1468 = vmatpush.bf16.msra.mxu0 %v1106
        %1469 = vmatpush.bf16.msra.mxu0 %v1104
        %1470 = vmatpush.bf16.msra.mxu0 %v1102
        %1471 = vmatpush.bf16.msra.mxu0 %v1100
        %1472 = vmatpush.bf16.msra.mxu0 %v1098
        %1473 = vmatpush.bf16.msra.mxu0 %v1096
        %1474 = vmatpush.bf16.msra.mxu0 %v1094
        %1475 = vmatpush.bf16.msra.mxu0 %v1092
        %1476 = vmatmul.bf16.gmra.mxu0 %v408
        %v1477 = vpop.f32.mrf.mxu0
        %v1478 = vadd.f32 %v1465, %v1477
        %v1479 = vpop.f32.mrf.mxu0
        %1480 = vdwg.mxu0
        %1481 = vmatpush.bf16.msra.mxu0 %v1122
        %1482 = vmatpush.bf16.msra.mxu0 %v1120
        %1483 = vmatpush.bf16.msra.mxu0 %v1118
        %1484 = vmatpush.bf16.msra.mxu0 %v1116
        %1485 = vmatpush.bf16.msra.mxu0 %v1114
        %1486 = vmatpush.bf16.msra.mxu0 %v1112
        %1487 = vmatpush.bf16.msra.mxu0 %v1110
        %1488 = vmatpush.bf16.msra.mxu0 %v1108
        %1489 = vmatmul.bf16.gmra.mxu0 %v409
        %v1490 = vpop.f32.mrf.mxu0
        %v1491 = vadd.f32 %v1478, %v1490
        %v1492 = vpop.f32.mrf.mxu0
        %1493 = vdwg.mxu0
        %1494 = vmatpush.bf16.msra.mxu0 %v1138
        %1495 = vmatpush.bf16.msra.mxu0 %v1136
        %1496 = vmatpush.bf16.msra.mxu0 %v1134
        %1497 = vmatpush.bf16.msra.mxu0 %v1132
        %1498 = vmatpush.bf16.msra.mxu0 %v1130
        %1499 = vmatpush.bf16.msra.mxu0 %v1128
        %1500 = vmatpush.bf16.msra.mxu0 %v1126
        %1501 = vmatpush.bf16.msra.mxu0 %v1124
        %1502 = vmatmul.bf16.gmra.mxu0 %v410
        %v1503 = vpop.f32.mrf.mxu0
        %v1504 = vadd.f32 %v1491, %v1503
        %v1505 = vpop.f32.mrf.mxu0
        %1506 = vdwg.mxu0
        %1507 = vmatpush.bf16.msra.mxu0 %v1154
        %1508 = vmatpush.bf16.msra.mxu0 %v1152
        %1509 = vmatpush.bf16.msra.mxu0 %v1150
        %1510 = vmatpush.bf16.msra.mxu0 %v1148
        %1511 = vmatpush.bf16.msra.mxu0 %v1146
        %1512 = vmatpush.bf16.msra.mxu0 %v1144
        %1513 = vmatpush.bf16.msra.mxu0 %v1142
        %1514 = vmatpush.bf16.msra.mxu0 %v1140
        %1515 = vmatmul.bf16.gmra.mxu0 %v413
        %v1516 = vpop.f32.mrf.mxu0
        %v1517 = vadd.f32 %v1504, %v1516
        %v1518 = vpop.f32.mrf.mxu0
        %1519 = vdwg.mxu0
        %1520 = vmatpush.bf16.msra.mxu0 %v1170
        %1521 = vmatpush.bf16.msra.mxu0 %v1168
        %1522 = vmatpush.bf16.msra.mxu0 %v1166
        %1523 = vmatpush.bf16.msra.mxu0 %v1164
        %1524 = vmatpush.bf16.msra.mxu0 %v1162
        %1525 = vmatpush.bf16.msra.mxu0 %v1160
        %1526 = vmatpush.bf16.msra.mxu0 %v1158
        %1527 = vmatpush.bf16.msra.mxu0 %v1156
        %1528 = vmatmul.bf16.gmra.mxu0 %v414
        %v1529 = vpop.f32.mrf.mxu0
        %v1530 = vadd.f32 %v1517, %v1529
        %v1531 = vpop.f32.mrf.mxu0
        %1532 = vdwg.mxu0
        %1533 = vmatpush.bf16.msra.mxu0 %v1186
        %1534 = vmatpush.bf16.msra.mxu0 %v1184
        %1535 = vmatpush.bf16.msra.mxu0 %v1182
        %1536 = vmatpush.bf16.msra.mxu0 %v1180
        %1537 = vmatpush.bf16.msra.mxu0 %v1178
        %1538 = vmatpush.bf16.msra.mxu0 %v1176
        %1539 = vmatpush.bf16.msra.mxu0 %v1174
        %1540 = vmatpush.bf16.msra.mxu0 %v1172
        %1541 = vmatmul.bf16.gmra.mxu0 %v415
        %v1542 = vpop.f32.mrf.mxu0
        %v1543 = vadd.f32 %v1530, %v1542
        %v1544 = vpop.f32.mrf.mxu0
        %1545 = vdwg.mxu0
        %1546 = vmatpush.bf16.msra.mxu0 %v1202
        %1547 = vmatpush.bf16.msra.mxu0 %v1200
        %1548 = vmatpush.bf16.msra.mxu0 %v1198
        %1549 = vmatpush.bf16.msra.mxu0 %v1196
        %1550 = vmatpush.bf16.msra.mxu0 %v1194
        %1551 = vmatpush.bf16.msra.mxu0 %v1192
        %1552 = vmatpush.bf16.msra.mxu0 %v1190
        %1553 = vmatpush.bf16.msra.mxu0 %v1188
        %1554 = vmatmul.bf16.gmra.mxu0 %v416
        %v1555 = vpop.f32.mrf.mxu0
        %v1556 = vadd.f32 %v1543, %v1555
        %v1557 = vpop.f32.mrf.mxu0
        %1558 = vdwg.mxu0
        %1559 = vmatpush.bf16.msra.mxu0 0
        %1560 = vmatpush.bf16.msra.mxu0 0
        %1561 = vmatpush.bf16.msra.mxu0 0
        %1562 = vmatpush.bf16.msra.mxu0 0
        %1563 = vmatpush.bf16.msra.mxu0 0
        %1564 = vmatpush.bf16.msra.mxu0 0
        %1565 = vmatpush.bf16.msra.mxu0 0
        %1566 = vmatpush.bf16.msra.mxu0 %v1204
        %1567 = vmatmul.bf16.gmra.mxu0 %v1401
        %v1568 = vpop.f32.mrf.mxu0
        %v1569 = vadd.f32 %v1556, %v1568
        %v1570 = vpop.f32.mrf.mxu0
        %1571 = vdwg.mxu0
        %1572 = vmatpush.bf16.msra.mxu0 %v1027
        %1573 = vmatpush.bf16.msra.mxu0 %v1025
        %1574 = vmatpush.bf16.msra.mxu0 %v1023
        %1575 = vmatpush.bf16.msra.mxu0 %v1021
        %1576 = vmatpush.bf16.msra.mxu0 %v1019
        %1577 = vmatpush.bf16.msra.mxu0 %v1017
        %1578 = vmatpush.bf16.msra.mxu0 %v1015
        %1579 = vmatpush.bf16.msra.mxu0 %v1013
        %1580 = vmatmul.bf16.gmra.mxu0 %v403
        %v1581 = vpop.f32.mrf.mxu0
        %v1582 = vadd.f32 0.0, %v1581
        %v1583 = vpop.f32.mrf.mxu0
        %1584 = vdwg.mxu0
        %1585 = vmatpush.bf16.msra.mxu0 %v1043
        %1586 = vmatpush.bf16.msra.mxu0 %v1041
        %1587 = vmatpush.bf16.msra.mxu0 %v1039
        %1588 = vmatpush.bf16.msra.mxu0 %v1037
        %1589 = vmatpush.bf16.msra.mxu0 %v1035
        %1590 = vmatpush.bf16.msra.mxu0 %v1033
        %1591 = vmatpush.bf16.msra.mxu0 %v1031
        %1592 = vmatpush.bf16.msra.mxu0 %v1029
        %1593 = vmatmul.bf16.gmra.mxu0 %v404
        %v1594 = vpop.f32.mrf.mxu0
        %v1595 = vadd.f32 %v1582, %v1594
        %v1596 = vpop.f32.mrf.mxu0
        %1597 = vdwg.mxu0
        %1598 = vmatpush.bf16.msra.mxu0 %v1059
        %1599 = vmatpush.bf16.msra.mxu0 %v1057
        %1600 = vmatpush.bf16.msra.mxu0 %v1055
        %1601 = vmatpush.bf16.msra.mxu0 %v1053
        %1602 = vmatpush.bf16.msra.mxu0 %v1051
        %1603 = vmatpush.bf16.msra.mxu0 %v1049
        %1604 = vmatpush.bf16.msra.mxu0 %v1047
        %1605 = vmatpush.bf16.msra.mxu0 %v1045
        %1606 = vmatmul.bf16.gmra.mxu0 %v405
        %v1607 = vpop.f32.mrf.mxu0
        %v1608 = vadd.f32 %v1595, %v1607
        %v1609 = vpop.f32.mrf.mxu0
        %1610 = vdwg.mxu0
        %1611 = vmatpush.bf16.msra.mxu0 %v1075
        %1612 = vmatpush.bf16.msra.mxu0 %v1073
        %1613 = vmatpush.bf16.msra.mxu0 %v1071
        %1614 = vmatpush.bf16.msra.mxu0 %v1069
        %1615 = vmatpush.bf16.msra.mxu0 %v1067
        %1616 = vmatpush.bf16.msra.mxu0 %v1065
        %1617 = vmatpush.bf16.msra.mxu0 %v1063
        %1618 = vmatpush.bf16.msra.mxu0 %v1061
        %1619 = vmatmul.bf16.gmra.mxu0 %v406
        %v1620 = vpop.f32.mrf.mxu0
        %v1621 = vadd.f32 %v1608, %v1620
        %v1622 = vpop.f32.mrf.mxu0
        %1623 = vdwg.mxu0
        %1624 = vmatpush.bf16.msra.mxu0 %v1091
        %1625 = vmatpush.bf16.msra.mxu0 %v1089
        %1626 = vmatpush.bf16.msra.mxu0 %v1087
        %1627 = vmatpush.bf16.msra.mxu0 %v1085
        %1628 = vmatpush.bf16.msra.mxu0 %v1083
        %1629 = vmatpush.bf16.msra.mxu0 %v1081
        %1630 = vmatpush.bf16.msra.mxu0 %v1079
        %1631 = vmatpush.bf16.msra.mxu0 %v1077
        %1632 = vmatmul.bf16.gmra.mxu0 %v407
        %v1633 = vpop.f32.mrf.mxu0
        %v1634 = vadd.f32 %v1621, %v1633
        %v1635 = vpop.f32.mrf.mxu0
        %1636 = vdwg.mxu0
        %1637 = vmatpush.bf16.msra.mxu0 %v1107
        %1638 = vmatpush.bf16.msra.mxu0 %v1105
        %1639 = vmatpush.bf16.msra.mxu0 %v1103
        %1640 = vmatpush.bf16.msra.mxu0 %v1101
        %1641 = vmatpush.bf16.msra.mxu0 %v1099
        %1642 = vmatpush.bf16.msra.mxu0 %v1097
        %1643 = vmatpush.bf16.msra.mxu0 %v1095
        %1644 = vmatpush.bf16.msra.mxu0 %v1093
        %1645 = vmatmul.bf16.gmra.mxu0 %v408
        %v1646 = vpop.f32.mrf.mxu0
        %v1647 = vadd.f32 %v1634, %v1646
        %v1648 = vpop.f32.mrf.mxu0
        %1649 = vdwg.mxu0
        %1650 = vmatpush.bf16.msra.mxu0 %v1123
        %1651 = vmatpush.bf16.msra.mxu0 %v1121
        %1652 = vmatpush.bf16.msra.mxu0 %v1119
        %1653 = vmatpush.bf16.msra.mxu0 %v1117
        %1654 = vmatpush.bf16.msra.mxu0 %v1115
        %1655 = vmatpush.bf16.msra.mxu0 %v1113
        %1656 = vmatpush.bf16.msra.mxu0 %v1111
        %1657 = vmatpush.bf16.msra.mxu0 %v1109
        %1658 = vmatmul.bf16.gmra.mxu0 %v409
        %v1659 = vpop.f32.mrf.mxu0
        %v1660 = vadd.f32 %v1647, %v1659
        %v1661 = vpop.f32.mrf.mxu0
        %1662 = vdwg.mxu0
        %1663 = vmatpush.bf16.msra.mxu0 %v1139
        %1664 = vmatpush.bf16.msra.mxu0 %v1137
        %1665 = vmatpush.bf16.msra.mxu0 %v1135
        %1666 = vmatpush.bf16.msra.mxu0 %v1133
        %1667 = vmatpush.bf16.msra.mxu0 %v1131
        %1668 = vmatpush.bf16.msra.mxu0 %v1129
        %1669 = vmatpush.bf16.msra.mxu0 %v1127
        %1670 = vmatpush.bf16.msra.mxu0 %v1125
        %1671 = vmatmul.bf16.gmra.mxu0 %v410
        %v1672 = vpop.f32.mrf.mxu0
        %v1673 = vadd.f32 %v1660, %v1672
        %v1674 = vpop.f32.mrf.mxu0
        %1675 = vdwg.mxu0
        %1676 = vmatpush.bf16.msra.mxu0 %v1155
        %1677 = vmatpush.bf16.msra.mxu0 %v1153
        %1678 = vmatpush.bf16.msra.mxu0 %v1151
        %1679 = vmatpush.bf16.msra.mxu0 %v1149
        %1680 = vmatpush.bf16.msra.mxu0 %v1147
        %1681 = vmatpush.bf16.msra.mxu0 %v1145
        %1682 = vmatpush.bf16.msra.mxu0 %v1143
        %1683 = vmatpush.bf16.msra.mxu0 %v1141
        %1684 = vmatmul.bf16.gmra.mxu0 %v413
        %v1685 = vpop.f32.mrf.mxu0
        %v1686 = vadd.f32 %v1673, %v1685
        %v1687 = vpop.f32.mrf.mxu0
        %1688 = vdwg.mxu0
        %1689 = vmatpush.bf16.msra.mxu0 %v1171
        %1690 = vmatpush.bf16.msra.mxu0 %v1169
        %1691 = vmatpush.bf16.msra.mxu0 %v1167
        %1692 = vmatpush.bf16.msra.mxu0 %v1165
        %1693 = vmatpush.bf16.msra.mxu0 %v1163
        %1694 = vmatpush.bf16.msra.mxu0 %v1161
        %1695 = vmatpush.bf16.msra.mxu0 %v1159
        %1696 = vmatpush.bf16.msra.mxu0 %v1157
        %1697 = vmatmul.bf16.gmra.mxu0 %v414
        %v1698 = vpop.f32.mrf.mxu0
        %v1699 = vadd.f32 %v1686, %v1698
        %v1700 = vpop.f32.mrf.mxu0
        %1701 = vdwg.mxu0
        %1702 = vmatpush.bf16.msra.mxu0 %v1187
        %1703 = vmatpush.bf16.msra.mxu0 %v1185
        %1704 = vmatpush.bf16.msra.mxu0 %v1183
        %1705 = vmatpush.bf16.msra.mxu0 %v1181
        %1706 = vmatpush.bf16.msra.mxu0 %v1179
        %1707 = vmatpush.bf16.msra.mxu0 %v1177
        %1708 = vmatpush.bf16.msra.mxu0 %v1175
        %1709 = vmatpush.bf16.msra.mxu0 %v1173
        %1710 = vmatmul.bf16.gmra.mxu0 %v415
        %v1711 = vpop.f32.mrf.mxu0
        %v1712 = vadd.f32 %v1699, %v1711
        %v1713 = vpop.f32.mrf.mxu0
        %1714 = vdwg.mxu0
        %1715 = vmatpush.bf16.msra.mxu0 %v1203
        %1716 = vmatpush.bf16.msra.mxu0 %v1201
        %1717 = vmatpush.bf16.msra.mxu0 %v1199
        %1718 = vmatpush.bf16.msra.mxu0 %v1197
        %1719 = vmatpush.bf16.msra.mxu0 %v1195
        %1720 = vmatpush.bf16.msra.mxu0 %v1193
        %1721 = vmatpush.bf16.msra.mxu0 %v1191
        %1722 = vmatpush.bf16.msra.mxu0 %v1189
        %1723 = vmatmul.bf16.gmra.mxu0 %v416
        %v1724 = vpop.f32.mrf.mxu0
        %v1725 = vadd.f32 %v1712, %v1724
        %v1726 = vpop.f32.mrf.mxu0
        %1727 = vdwg.mxu0
        %1728 = vmatpush.bf16.msra.mxu0 0
        %1729 = vmatpush.bf16.msra.mxu0 0
        %1730 = vmatpush.bf16.msra.mxu0 0
        %1731 = vmatpush.bf16.msra.mxu0 0
        %1732 = vmatpush.bf16.msra.mxu0 0
        %1733 = vmatpush.bf16.msra.mxu0 0
        %1734 = vmatpush.bf16.msra.mxu0 0
        %1735 = vmatpush.bf16.msra.mxu0 %v1205
        %1736 = vmatmul.bf16.gmra.mxu0 %v1401
        %v1737 = vpop.f32.mrf.mxu0
        %v1738 = vadd.f32 %v1725, %v1737
        %v1739 = vpop.f32.mrf.mxu0
        %1740 = vdwg.mxu0
        %v1743 = vrot.slane %v1738, 6
        %vm1744 = vcmask 1041408
        %v1745 = vsel %vm1744, %v1569, %v1743
        %1747 = vst [vmem:[%s202] sm:$0xf] %v1745
        %s1748 = sand.u32 %s82, 1
        %s1749 = scalar_lea.sflag [#allocation4], %s1748
        %s1750 = sand.u32 %s82, 1
        %s1751 = smul.addr %s1750, 4
        %s1752 = scalar_lea.vmem [#allocation7], %s1751
        // Predicated region
        $region37: #{tpu_custom_call.1} parent=27 // pred_check
          %p1753 = pneg %p92
        $region38: #{tpu_custom_call.1} parent=27 // pred_check_branch
          %1755 = sbr.rel (%p1753) target = $region40
        $region39: #{tpu_custom_call.1} parent=27 // pred_region
          %s1756 = smul.u32 2, %s22
          %1758 = vsyncadd %s1749, 0
          %s1759 = smul.addr %s1756, 2
          %s1760 = scalar_lea.hbm %s2, %s1759
          %s1762 = sshll.u32 %s1752, 4
          %s1763 = int_to_ptr.vmem [resolvable:$true] %s1762
          %s1764 = sshll.u32 %s1760, 4
          %s1765 = int_to_ptr.hbm [resolvable:$true] %s1764
          %1767 = dma.vmem_to_hbm [thread:$0]  %s1763, 64, %s1765, %s1749
        $region40: #{tpu_custom_call.1} parent=27 // pred_fallthru
          _
      $region28: #{tpu_custom_call.1} parent=5 // pred_fallthru
        _
      %p1768 = scmp.le.s32.totalorder 2, %s17
      // Predicated region
      $region41: #{tpu_custom_call.1} parent=5 // pred_check
        %p1769 = pneg %p1768
      $region42: #{tpu_custom_call.1} parent=5 // pred_check_branch
        %1771 = sbr.rel (%p1769) target = $region44
      $region43: #{tpu_custom_call.1} parent=5 // pred_region
        %s1772 = ssub.s32 %s17, 2
        // Predicated region
        $region45: #{tpu_custom_call.1} parent=43 // pred_check
          %p1773 = pneg %p98
        $region46: #{tpu_custom_call.1} parent=43 // pred_check_branch
          %1775 = sbr.rel (%p1773) target = $region48
        $region47: #{tpu_custom_call.1} parent=43 // pred_region
          %s1776 = sand.u32 %s83, 1
          %s1777 = scalar_lea.sflag [#allocation4], %s1776
          %s1778 = sand.u32 %s83, 1
          %s1779 = smul.addr %s1778, 4
          %s1780 = scalar_lea.vmem [#allocation7], %s1779
          %1782 = dma.done %s1777, 64
        $region48: #{tpu_custom_call.1} parent=43 // pred_fallthru
          _
      $region44: #{tpu_custom_call.1} parent=5 // pred_fallthru
        _
    $region6: #{tpu_custom_call.1} parent=1 // loop_footer
      %s21 = sadd.s32 1, %s17
    $region7: #{tpu_custom_call.1} parent=1 // loop_footer_branch
      %16 = sbr.rel target = $region3
    $region8: #{tpu_custom_call.1} parent=1 // loop_exit
      _
    %1783 = vsyncpa [#allocation3], 1
    %s1784 = scalar_lea.sflag [#allocation3], 1
    %1785 = vsyncpa %s1784, 1
    %1786 = vsyncpa [#allocation6], 1
    %s1787 = scalar_lea.sflag [#allocation6], 1
    %1788 = vsyncpa %s1787, 1
    %1789 = vsyncpa [#allocation4], 1
    %s1790 = scalar_lea.sflag [#allocation4], 1
    %1791 = vsyncpa %s1790, 1

</llo_original>
